<compile_context>
chip_gen: v6e
topology: v6e:2x2x1
jax: 0.10.0
libtpu: 0.0.40
codegen_flags: <defaults>
</compile_context>

<pallas_src>
import functools

import jax
import jax.numpy as jnp
from jax.experimental import pallas as pl
from jax.experimental.pallas import tpu as pltpu


# Tap order matches PyTorch's 3x3 kernel raster order: k = (oy+1)*3 + (ox+1).
_TAPS = tuple((oy, ox) for oy in (-1, 0, 1) for ox in (-1, 0, 1))


def _make_border_masks(H, W):
    """Four (1, H*W) boolean masks that zero out-of-image taps (the 1-px halo)."""
    P = H * W
    pidx = jax.lax.broadcasted_iota(jnp.int32, (1, P), 1)
    if (W & (W - 1)) == 0:                       # power-of-two fast path (no vector div)
        w = pidx & (W - 1)
    else:
        w = pidx % W
    not_top = pidx >= W                          # source row h-1 is valid
    not_bot = pidx < (H - 1) * W                 # source row h+1 is valid
    not_left = w >= 1                            # source col w-1 is valid
    not_right = w < (W - 1)                      # source col w+1 is valid
    return not_top, not_bot, not_left, not_right


def _dsconv_bn_relu_stage(xf, wf_ref, b_ref, masks, H, W):
    """One fused DSConv + BN(eval) + ReLU stage in (C, H*W) lane-dense layout.

    xf     : (Cin, H*W) f32 activation (lane dim = H*W).
    wf_ref : (9, Cout, Cin) fused per-tap weights  dw[k,c]*pw[c,o]*bn_scale[o].
    b_ref  : (Cout, 1)      fused bias (dw-bias, pw-bias and BN shift folded in).
    """
    P = H * W
    not_top, not_bot, not_left, not_right = masks
    acc = None
    for k, (oy, ox) in enumerate(_TAPS):
        s = oy * W + ox                          # source offset in flat spatial index
        t = xf if s == 0 else pltpu.roll(xf, shift=(-s) % P, axis=1)  # t[:,p]=xf[:,(p+s)%P]
        mask = None
        if oy == -1:
            mask = not_top
        elif oy == 1:
            mask = not_bot
        if ox == -1:
            mask = not_left if mask is None else jnp.logical_and(mask, not_left)
        elif ox == 1:
            mask = not_right if mask is None else jnp.logical_and(mask, not_right)
        if mask is not None:
            t = jnp.where(mask, t, 0.0)
        part = jnp.dot(wf_ref[k], t, preferred_element_type=jnp.float32)  # (Cout, P) on MXU
        acc = part if acc is None else acc + part
    acc = acc + b_ref[...]                       # (Cout, 1) broadcast
    return jnp.maximum(acc, 0.0)


def _kan_double_conv_kernel(x_ref, w1_ref, b1_ref, w2_ref, b2_ref, o_ref, *, H, W):
    """Fused double (DSConv + BN + ReLU) for one batch element, (C, H*W) layout."""
    masks = _make_border_masks(H, W)
    x = x_ref[0].astype(jnp.float32)                               # (Cin,  H*W)
    a1 = _dsconv_bn_relu_stage(x, w1_ref, b1_ref, masks, H, W)     # (Cmid, H*W)
    a2 = _dsconv_bn_relu_stage(a1, w2_ref, b2_ref, masks, H, W)    # (Cout, H*W)
    o_ref[0] = a2.astype(o_ref.dtype)


def kan_double_conv_forward(x_nchw, params):
    """Eval-mode KANDoubleConv forward (use_kan disabled, no DropBlock)."""
    B, Cin, H, W = x_nchw.shape
    P = H * W
    w1, b1 = params["stage1"]          # (9, Cmid, Cin), (Cmid, 1)
    w2, b2 = params["stage2"]          # (9, Cout, Cmid), (Cout, 1)
    Cmid, Cout = w1.shape[1], w2.shape[1]

    x_flat = x_nchw.reshape(B, Cin, P)           # free reshape, no transpose

    kernel = functools.partial(_kan_double_conv_kernel, H=H, W=W)
    flops = 2 * B * P * 9 * (Cin * Cmid + Cmid * Cout)
    bytes_accessed = 4 * (B * Cin * P + B * Cout * P
                          + w1.size + b1.size + w2.size + b2.size)

    out = pl.pallas_call(
        kernel,
        out_shape=jax.ShapeDtypeStruct((B, Cout, P), jnp.float32),
        grid_spec=pltpu.PrefetchScalarGridSpec(
            num_scalar_prefetch=0,
            grid=(B,),
            in_specs=[
                pl.BlockSpec((1, Cin, P), lambda b: (b, 0, 0)),
                pl.BlockSpec((9, Cmid, Cin), lambda b: (0, 0, 0)),
                pl.BlockSpec((Cmid, 1), lambda b: (0, 0)),
                pl.BlockSpec((9, Cout, Cmid), lambda b: (0, 0, 0)),
                pl.BlockSpec((Cout, 1), lambda b: (0, 0)),
            ],
            out_specs=pl.BlockSpec((1, Cout, P), lambda b: (b, 0, 0)),
        ),
        compiler_params=pltpu.CompilerParams(
            dimension_semantics=("parallel",)),
        cost_estimate=pl.CostEstimate(flops=flops, transcendentals=0,
                                      bytes_accessed=bytes_accessed),
    )(x_flat, w1, b1, w2, b2)
    return out.reshape(B, Cout, H, W)


# ------------------------- parameter construction / folding -------------------

def make_raw_stage_params(key, cin, cout):
    """Raw PyTorch-style params: depthwise, pointwise, BatchNorm (eval stats)."""
    ks = jax.random.split(key, 8)
    dw9 = jax.random.normal(ks[0], (9, cin), jnp.float32) * 0.2     # (cin,1,3,3) flattened
    dwb = jax.random.normal(ks[1], (cin,), jnp.float32) * 0.05
    pw = jax.random.normal(ks[2], (cin, cout), jnp.float32) * 0.2   # (cout,cin,1,1)
    pwb = jax.random.normal(ks[3], (cout,), jnp.float32) * 0.05
    gamma = 1.0 + 0.1 * jax.random.normal(ks[4], (cout,), jnp.float32)
    beta = 0.1 * jax.random.normal(ks[5], (cout,), jnp.float32)
    mean = 0.05 * jax.random.normal(ks[6], (cout,), jnp.float32)
    var = 1.0 + 0.1 * jnp.abs(jax.random.normal(ks[7], (cout,), jnp.float32))
    return (dw9, dwb, pw, pwb, gamma, beta, mean, var)


def fold_stage_params(dw9, dwb, pw, pwb, gamma, beta, mean, var, eps=1e-5):
    """Fold depthwise weights, both biases and eval-BN into (9,Cout,Cin) + (Cout,1)."""
    scale = gamma / jnp.sqrt(var + eps)                 # (Cout,)
    shift = beta - mean * scale
    pw_s = pw * scale[None, :]                          # (Cin, Cout)  BN folded into 1x1
    wf = jnp.einsum("kc,co->koc", dw9, pw_s)            # (9, Cout, Cin)
    bias = dwb @ pw_s + pwb * scale + shift             # (Cout,)
    return wf.astype(jnp.float32), bias[:, None].astype(jnp.float32)


# ----------------------------- reference (plain JAX) --------------------------

def _ref_stage(x_nchw, dw9, dwb, pw, pwb, gamma, beta, mean, var, eps=1e-5):
    B, C, H, W = x_nchw.shape
    xp = jnp.pad(x_nchw, ((0, 0), (0, 0), (1, 1), (1, 1)))
    acc = jnp.zeros((B, C, H, W), jnp.float32)
    for k in range(9):
        dy, dx = k // 3, k % 3
        acc = acc + xp[:, :, dy:dy + H, dx:dx + W] * dw9[k][None, :, None, None]
    acc = acc + dwb[None, :, None, None]
    y = jnp.einsum("bchw,co->bohw", acc, pw) + pwb[None, :, None, None]
    scale = gamma / jnp.sqrt(var + eps)
    shift = beta - mean * scale
    y = y * scale[None, :, None, None] + shift[None, :, None, None]
    return jnp.maximum(y, 0.0)


def ref_forward(x_nchw, raw1, raw2):
    y = _ref_stage(x_nchw, *raw1)
    y = _ref_stage(y, *raw2)
    return y


if __name__ == "__main__":
    key = jax.random.PRNGKey(0)
    k_x, k_s1, k_s2 = jax.random.split(key, 3)

    B, Cin, Cout, H, W = 2, 4, 8, 16, 16
    x = jax.random.normal(k_x, (B, Cin, H, W), jnp.float32)         # PyTorch NCHW input

    raw1 = make_raw_stage_params(k_s1, Cin, Cout)
    raw2 = make_raw_stage_params(k_s2, Cout, Cout)
    fused_params = {
        "stage1": fold_stage_params(*raw1),
        "stage2": fold_stage_params(*raw2),
    }

    fwd = jax.jit(kan_double_conv_forward)
    out = jax.block_until_ready(fwd(x, fused_params))
    ref = jax.block_until_ready(ref_forward(x, raw1, raw2))

    assert out.shape == (B, Cout, H, W), out.shape
    err = float(jnp.max(jnp.abs(out - ref)))
    assert jnp.allclose(out, ref, rtol=1e-3, atol=1e-3), err
    print("KERNEL_OK")
</pallas_src>

<mosaic_0001>
module attributes {stable_mosaic.version = 11 : i64} {
  func.func @_kan_double_conv_kernel(%arg0: i32, %arg1: memref<1x4x256xf32, #tpu.memory_space<vmem>>, %arg2: memref<9x8x4xf32, #tpu.memory_space<vmem>>, %arg3: memref<8x1xf32, #tpu.memory_space<vmem>>, %arg4: memref<9x8x8xf32, #tpu.memory_space<vmem>>, %arg5: memref<8x1xf32, #tpu.memory_space<vmem>>, %arg6: memref<1x8x256xf32, #tpu.memory_space<vmem>>) attributes {dimension_semantics = [#tpu.dimension_semantics<parallel>], iteration_bounds = array<i64: 2>, scalar_prefetch = 0 : i64, scratch_operands = 0 : i64, tpu.core_type = #tpu.core_type<tc>, window_params = [{transform_indices = @transform_0, window_bounds = array<i64: 1, 4, 256>}, {pipeline_mode = #tpu.pipeline_mode<synchronous>, transform_indices = @transform_1, window_bounds = array<i64: 9, 8, 4>}, {pipeline_mode = #tpu.pipeline_mode<synchronous>, transform_indices = @transform_2, window_bounds = array<i64: 8, 1>}, {pipeline_mode = #tpu.pipeline_mode<synchronous>, transform_indices = @transform_3, window_bounds = array<i64: 9, 8, 8>}, {pipeline_mode = #tpu.pipeline_mode<synchronous>, transform_indices = @transform_4, window_bounds = array<i64: 8, 1>}, {transform_indices = @transform_5, window_bounds = array<i64: 1, 8, 256>}]} {
    %0 = tpu.iota {dimensions = array<i32: 1>} : vector<1x256xi32>
    %c15_i32 = arith.constant 15 : i32
    %1 = vector.broadcast %c15_i32 : i32 to vector<1x256xi32>
    %2 = arith.andi %0, %1 : vector<1x256xi32>
    %c16_i32 = arith.constant 16 : i32
    %3 = vector.broadcast %c16_i32 : i32 to vector<1x256xi32>
    %4 = arith.cmpi sge, %0, %3 : vector<1x256xi32>
    %c240_i32 = arith.constant 240 : i32
    %5 = vector.broadcast %c240_i32 : i32 to vector<1x256xi32>
    %6 = arith.cmpi slt, %0, %5 : vector<1x256xi32>
    %c1_i32 = arith.constant 1 : i32
    %7 = vector.broadcast %c1_i32 : i32 to vector<1x256xi32>
    %8 = arith.cmpi sge, %2, %7 : vector<1x256xi32>
    %c15_i32_0 = arith.constant 15 : i32
    %9 = vector.broadcast %c15_i32_0 : i32 to vector<1x256xi32>
    %10 = arith.cmpi slt, %2, %9 : vector<1x256xi32>
    %c0 = arith.constant 0 : index
    %c0_1 = arith.constant 0 : index
    %c0_2 = arith.constant 0 : index
    %11 = vector.load %arg1[%c0, %c0_1, %c0_2] : memref<1x4x256xf32, #tpu.memory_space<vmem>>, vector<1x4x256xf32>
    %12 = vector.shape_cast %11 : vector<1x4x256xf32> to vector<4x256xf32>
    %c17_i32 = arith.constant 17 : i32
    %13 = tpu.dynamic_rotate %12 by %c17_i32 dim 1 : vector<4x256xf32>, i32 -> vector<4x256xf32>
    %14 = arith.andi %4, %8 : vector<1x256xi1>
    %cst = arith.constant 0.000000e+00 : f32
    %15 = vector.shape_cast %14 : vector<1x256xi1> to vector<1x256xi1>
    %16 = vector.broadcast %15 : vector<1x256xi1> to vector<4x256xi1>
    %17 = vector.broadcast %cst : f32 to vector<4x256xf32>
    %18 = arith.select %16, %13, %17 : vector<4x256xi1>, vector<4x256xf32>
    %c0_3 = arith.constant 0 : index
    %c0_4 = arith.constant 0 : index
    %c0_5 = arith.constant 0 : index
    %19 = vector.load %arg2[%c0_3, %c0_4, %c0_5] : memref<9x8x4xf32, #tpu.memory_space<vmem>>, vector<1x8x4xf32>
    %20 = vector.shape_cast %19 : vector<1x8x4xf32> to vector<8x4xf32>
    %cst_6 = arith.constant dense<0.000000e+00> : vector<8x256xf32>
    %21 = tpu.matmul %20, %18, %cst_6 {dimension_numbers = #tpu.dot_dimension_numbers<[1], [0], [0], [1], [0, 0, 1, 1], [], []>} : vector<8x4xf32>, vector<4x256xf32>, vector<8x256xf32> -> vector<8x256xf32>
    %c16_i32_7 = arith.constant 16 : i32
    %22 = tpu.dynamic_rotate %12 by %c16_i32_7 dim 1 : vector<4x256xf32>, i32 -> vector<4x256xf32>
    %cst_8 = arith.constant 0.000000e+00 : f32
    %23 = vector.shape_cast %4 : vector<1x256xi1> to vector<1x256xi1>
    %24 = vector.broadcast %23 : vector<1x256xi1> to vector<4x256xi1>
    %25 = vector.broadcast %cst_8 : f32 to vector<4x256xf32>
    %26 = arith.select %24, %22, %25 : vector<4x256xi1>, vector<4x256xf32>
    %c1 = arith.constant 1 : index
    %c0_9 = arith.constant 0 : index
    %c0_10 = arith.constant 0 : index
    %27 = vector.load %arg2[%c1, %c0_9, %c0_10] : memref<9x8x4xf32, #tpu.memory_space<vmem>>, vector<1x8x4xf32>
    %28 = vector.shape_cast %27 : vector<1x8x4xf32> to vector<8x4xf32>
    %cst_11 = arith.constant dense<0.000000e+00> : vector<8x256xf32>
    %29 = tpu.matmul %28, %26, %cst_11 {dimension_numbers = #tpu.dot_dimension_numbers<[1], [0], [0], [1], [0, 0, 1, 1], [], []>} : vector<8x4xf32>, vector<4x256xf32>, vector<8x256xf32> -> vector<8x256xf32>
    %30 = arith.addf %21, %29 : vector<8x256xf32>
    %c15_i32_12 = arith.constant 15 : i32
    %31 = tpu.dynamic_rotate %12 by %c15_i32_12 dim 1 : vector<4x256xf32>, i32 -> vector<4x256xf32>
    %32 = arith.andi %4, %10 : vector<1x256xi1>
    %cst_13 = arith.constant 0.000000e+00 : f32
    %33 = vector.shape_cast %32 : vector<1x256xi1> to vector<1x256xi1>
    %34 = vector.broadcast %33 : vector<1x256xi1> to vector<4x256xi1>
    %35 = vector.broadcast %cst_13 : f32 to vector<4x256xf32>
    %36 = arith.select %34, %31, %35 : vector<4x256xi1>, vector<4x256xf32>
    %c2 = arith.constant 2 : index
    %c0_14 = arith.constant 0 : index
    %c0_15 = arith.constant 0 : index
    %37 = vector.load %arg2[%c2, %c0_14, %c0_15] : memref<9x8x4xf32, #tpu.memory_space<vmem>>, vector<1x8x4xf32>
    %38 = vector.shape_cast %37 : vector<1x8x4xf32> to vector<8x4xf32>
    %cst_16 = arith.constant dense<0.000000e+00> : vector<8x256xf32>
    %39 = tpu.matmul %38, %36, %cst_16 {dimension_numbers = #tpu.dot_dimension_numbers<[1], [0], [0], [1], [0, 0, 1, 1], [], []>} : vector<8x4xf32>, vector<4x256xf32>, vector<8x256xf32> -> vector<8x256xf32>
    %40 = arith.addf %30, %39 : vector<8x256xf32>
    %c1_i32_17 = arith.constant 1 : i32
    %41 = tpu.dynamic_rotate %12 by %c1_i32_17 dim 1 : vector<4x256xf32>, i32 -> vector<4x256xf32>
    %cst_18 = arith.constant 0.000000e+00 : f32
    %42 = vector.shape_cast %8 : vector<1x256xi1> to vector<1x256xi1>
    %43 = vector.broadcast %42 : vector<1x256xi1> to vector<4x256xi1>
    %44 = vector.broadcast %cst_18 : f32 to vector<4x256xf32>
    %45 = arith.select %43, %41, %44 : vector<4x256xi1>, vector<4x256xf32>
    %c3 = arith.constant 3 : index
    %c0_19 = arith.constant 0 : index
    %c0_20 = arith.constant 0 : index
    %46 = vector.load %arg2[%c3, %c0_19, %c0_20] : memref<9x8x4xf32, #tpu.memory_space<vmem>>, vector<1x8x4xf32>
    %47 = vector.shape_cast %46 : vector<1x8x4xf32> to vector<8x4xf32>
    %cst_21 = arith.constant dense<0.000000e+00> : vector<8x256xf32>
    %48 = tpu.matmul %47, %45, %cst_21 {dimension_numbers = #tpu.dot_dimension_numbers<[1], [0], [0], [1], [0, 0, 1, 1], [], []>} : vector<8x4xf32>, vector<4x256xf32>, vector<8x256xf32> -> vector<8x256xf32>
    %49 = arith.addf %40, %48 : vector<8x256xf32>
    %c4 = arith.constant 4 : index
    %c0_22 = arith.constant 0 : index
    %c0_23 = arith.constant 0 : index
    %50 = vector.load %arg2[%c4, %c0_22, %c0_23] : memref<9x8x4xf32, #tpu.memory_space<vmem>>, vector<1x8x4xf32>
    %51 = vector.shape_cast %50 : vector<1x8x4xf32> to vector<8x4xf32>
    %cst_24 = arith.constant dense<0.000000e+00> : vector<8x256xf32>
    %52 = tpu.matmul %51, %12, %cst_24 {dimension_numbers = #tpu.dot_dimension_numbers<[1], [0], [0], [1], [0, 0, 1, 1], [], []>} : vector<8x4xf32>, vector<4x256xf32>, vector<8x256xf32> -> vector<8x256xf32>
    %53 = arith.addf %49, %52 : vector<8x256xf32>
    %c255_i32 = arith.constant 255 : i32
    %54 = tpu.dynamic_rotate %12 by %c255_i32 dim 1 : vector<4x256xf32>, i32 -> vector<4x256xf32>
    %cst_25 = arith.constant 0.000000e+00 : f32
    %55 = vector.shape_cast %10 : vector<1x256xi1> to vector<1x256xi1>
    %56 = vector.broadcast %55 : vector<1x256xi1> to vector<4x256xi1>
    %57 = vector.broadcast %cst_25 : f32 to vector<4x256xf32>
    %58 = arith.select %56, %54, %57 : vector<4x256xi1>, vector<4x256xf32>
    %c5 = arith.constant 5 : index
    %c0_26 = arith.constant 0 : index
    %c0_27 = arith.constant 0 : index
    %59 = vector.load %arg2[%c5, %c0_26, %c0_27] : memref<9x8x4xf32, #tpu.memory_space<vmem>>, vector<1x8x4xf32>
    %60 = vector.shape_cast %59 : vector<1x8x4xf32> to vector<8x4xf32>
    %cst_28 = arith.constant dense<0.000000e+00> : vector<8x256xf32>
    %61 = tpu.matmul %60, %58, %cst_28 {dimension_numbers = #tpu.dot_dimension_numbers<[1], [0], [0], [1], [0, 0, 1, 1], [], []>} : vector<8x4xf32>, vector<4x256xf32>, vector<8x256xf32> -> vector<8x256xf32>
    %62 = arith.addf %53, %61 : vector<8x256xf32>
    %c241_i32 = arith.constant 241 : i32
    %63 = tpu.dynamic_rotate %12 by %c241_i32 dim 1 : vector<4x256xf32>, i32 -> vector<4x256xf32>
    %64 = arith.andi %6, %8 : vector<1x256xi1>
    %cst_29 = arith.constant 0.000000e+00 : f32
    %65 = vector.shape_cast %64 : vector<1x256xi1> to vector<1x256xi1>
    %66 = vector.broadcast %65 : vector<1x256xi1> to vector<4x256xi1>
    %67 = vector.broadcast %cst_29 : f32 to vector<4x256xf32>
    %68 = arith.select %66, %63, %67 : vector<4x256xi1>, vector<4x256xf32>
    %c6 = arith.constant 6 : index
    %c0_30 = arith.constant 0 : index
    %c0_31 = arith.constant 0 : index
    %69 = vector.load %arg2[%c6, %c0_30, %c0_31] : memref<9x8x4xf32, #tpu.memory_space<vmem>>, vector<1x8x4xf32>
    %70 = vector.shape_cast %69 : vector<1x8x4xf32> to vector<8x4xf32>
    %cst_32 = arith.constant dense<0.000000e+00> : vector<8x256xf32>
    %71 = tpu.matmul %70, %68, %cst_32 {dimension_numbers = #tpu.dot_dimension_numbers<[1], [0], [0], [1], [0, 0, 1, 1], [], []>} : vector<8x4xf32>, vector<4x256xf32>, vector<8x256xf32> -> vector<8x256xf32>
    %72 = arith.addf %62, %71 : vector<8x256xf32>
    %c240_i32_33 = arith.constant 240 : i32
    %73 = tpu.dynamic_rotate %12 by %c240_i32_33 dim 1 : vector<4x256xf32>, i32 -> vector<4x256xf32>
    %cst_34 = arith.constant 0.000000e+00 : f32
    %74 = vector.shape_cast %6 : vector<1x256xi1> to vector<1x256xi1>
    %75 = vector.broadcast %74 : vector<1x256xi1> to vector<4x256xi1>
    %76 = vector.broadcast %cst_34 : f32 to vector<4x256xf32>
    %77 = arith.select %75, %73, %76 : vector<4x256xi1>, vector<4x256xf32>
    %c7 = arith.constant 7 : index
    %c0_35 = arith.constant 0 : index
    %c0_36 = arith.constant 0 : index
    %78 = vector.load %arg2[%c7, %c0_35, %c0_36] : memref<9x8x4xf32, #tpu.memory_space<vmem>>, vector<1x8x4xf32>
    %79 = vector.shape_cast %78 : vector<1x8x4xf32> to vector<8x4xf32>
    %cst_37 = arith.constant dense<0.000000e+00> : vector<8x256xf32>
    %80 = tpu.matmul %79, %77, %cst_37 {dimension_numbers = #tpu.dot_dimension_numbers<[1], [0], [0], [1], [0, 0, 1, 1], [], []>} : vector<8x4xf32>, vector<4x256xf32>, vector<8x256xf32> -> vector<8x256xf32>
    %81 = arith.addf %72, %80 : vector<8x256xf32>
    %c239_i32 = arith.constant 239 : i32
    %82 = tpu.dynamic_rotate %12 by %c239_i32 dim 1 : vector<4x256xf32>, i32 -> vector<4x256xf32>
    %83 = arith.andi %6, %10 : vector<1x256xi1>
    %cst_38 = arith.constant 0.000000e+00 : f32
    %84 = vector.shape_cast %83 : vector<1x256xi1> to vector<1x256xi1>
    %85 = vector.broadcast %84 : vector<1x256xi1> to vector<4x256xi1>
    %86 = vector.broadcast %cst_38 : f32 to vector<4x256xf32>
    %87 = arith.select %85, %82, %86 : vector<4x256xi1>, vector<4x256xf32>
    %c8 = arith.constant 8 : index
    %c0_39 = arith.constant 0 : index
    %c0_40 = arith.constant 0 : index
    %88 = vector.load %arg2[%c8, %c0_39, %c0_40] : memref<9x8x4xf32, #tpu.memory_space<vmem>>, vector<1x8x4xf32>
    %89 = vector.shape_cast %88 : vector<1x8x4xf32> to vector<8x4xf32>
    %cst_41 = arith.constant dense<0.000000e+00> : vector<8x256xf32>
    %90 = tpu.matmul %89, %87, %cst_41 {dimension_numbers = #tpu.dot_dimension_numbers<[1], [0], [0], [1], [0, 0, 1, 1], [], []>} : vector<8x4xf32>, vector<4x256xf32>, vector<8x256xf32> -> vector<8x256xf32>
    %91 = arith.addf %81, %90 : vector<8x256xf32>
    %c0_42 = arith.constant 0 : index
    %c0_43 = arith.constant 0 : index
    %92 = vector.load %arg3[%c0_42, %c0_43] : memref<8x1xf32, #tpu.memory_space<vmem>>, vector<8x1xf32>
    %93 = vector.broadcast %92 : vector<8x1xf32> to vector<8x256xf32>
    %94 = arith.addf %91, %93 : vector<8x256xf32>
    %cst_44 = arith.constant 0.000000e+00 : f32
    %95 = vector.broadcast %cst_44 : f32 to vector<8x256xf32>
    %96 = arith.maximumf %94, %95 : vector<8x256xf32>
    %c17_i32_45 = arith.constant 17 : i32
    %97 = tpu.dynamic_rotate %96 by %c17_i32_45 dim 1 : vector<8x256xf32>, i32 -> vector<8x256xf32>
    %98 = arith.andi %4, %8 : vector<1x256xi1>
    %cst_46 = arith.constant 0.000000e+00 : f32
    %99 = vector.shape_cast %98 : vector<1x256xi1> to vector<1x256xi1>
    %100 = vector.broadcast %99 : vector<1x256xi1> to vector<8x256xi1>
    %101 = vector.broadcast %cst_46 : f32 to vector<8x256xf32>
    %102 = arith.select %100, %97, %101 : vector<8x256xi1>, vector<8x256xf32>
    %c0_47 = arith.constant 0 : index
    %c0_48 = arith.constant 0 : index
    %c0_49 = arith.constant 0 : index
    %103 = vector.load %arg4[%c0_47, %c0_48, %c0_49] : memref<9x8x8xf32, #tpu.memory_space<vmem>>, vector<1x8x8xf32>
    %104 = vector.shape_cast %103 : vector<1x8x8xf32> to vector<8x8xf32>
    %cst_50 = arith.constant dense<0.000000e+00> : vector<8x256xf32>
    %105 = tpu.matmul %104, %102, %cst_50 {dimension_numbers = #tpu.dot_dimension_numbers<[1], [0], [0], [1], [0, 0, 1, 1], [], []>} : vector<8x8xf32>, vector<8x256xf32>, vector<8x256xf32> -> vector<8x256xf32>
    %c16_i32_51 = arith.constant 16 : i32
    %106 = tpu.dynamic_rotate %96 by %c16_i32_51 dim 1 : vector<8x256xf32>, i32 -> vector<8x256xf32>
    %cst_52 = arith.constant 0.000000e+00 : f32
    %107 = vector.shape_cast %4 : vector<1x256xi1> to vector<1x256xi1>
    %108 = vector.broadcast %107 : vector<1x256xi1> to vector<8x256xi1>
    %109 = vector.broadcast %cst_52 : f32 to vector<8x256xf32>
    %110 = arith.select %108, %106, %109 : vector<8x256xi1>, vector<8x256xf32>
    %c1_53 = arith.constant 1 : index
    %c0_54 = arith.constant 0 : index
    %c0_55 = arith.constant 0 : index
    %111 = vector.load %arg4[%c1_53, %c0_54, %c0_55] : memref<9x8x8xf32, #tpu.memory_space<vmem>>, vector<1x8x8xf32>
    %112 = vector.shape_cast %111 : vector<1x8x8xf32> to vector<8x8xf32>
    %cst_56 = arith.constant dense<0.000000e+00> : vector<8x256xf32>
    %113 = tpu.matmul %112, %110, %cst_56 {dimension_numbers = #tpu.dot_dimension_numbers<[1], [0], [0], [1], [0, 0, 1, 1], [], []>} : vector<8x8xf32>, vector<8x256xf32>, vector<8x256xf32> -> vector<8x256xf32>
    %114 = arith.addf %105, %113 : vector<8x256xf32>
    %c15_i32_57 = arith.constant 15 : i32
    %115 = tpu.dynamic_rotate %96 by %c15_i32_57 dim 1 : vector<8x256xf32>, i32 -> vector<8x256xf32>
    %116 = arith.andi %4, %10 : vector<1x256xi1>
    %cst_58 = arith.constant 0.000000e+00 : f32
    %117 = vector.shape_cast %116 : vector<1x256xi1> to vector<1x256xi1>
    %118 = vector.broadcast %117 : vector<1x256xi1> to vector<8x256xi1>
    %119 = vector.broadcast %cst_58 : f32 to vector<8x256xf32>
    %120 = arith.select %118, %115, %119 : vector<8x256xi1>, vector<8x256xf32>
    %c2_59 = arith.constant 2 : index
    %c0_60 = arith.constant 0 : index
    %c0_61 = arith.constant 0 : index
    %121 = vector.load %arg4[%c2_59, %c0_60, %c0_61] : memref<9x8x8xf32, #tpu.memory_space<vmem>>, vector<1x8x8xf32>
    %122 = vector.shape_cast %121 : vector<1x8x8xf32> to vector<8x8xf32>
    %cst_62 = arith.constant dense<0.000000e+00> : vector<8x256xf32>
    %123 = tpu.matmul %122, %120, %cst_62 {dimension_numbers = #tpu.dot_dimension_numbers<[1], [0], [0], [1], [0, 0, 1, 1], [], []>} : vector<8x8xf32>, vector<8x256xf32>, vector<8x256xf32> -> vector<8x256xf32>
    %124 = arith.addf %114, %123 : vector<8x256xf32>
    %c1_i32_63 = arith.constant 1 : i32
    %125 = tpu.dynamic_rotate %96 by %c1_i32_63 dim 1 : vector<8x256xf32>, i32 -> vector<8x256xf32>
    %cst_64 = arith.constant 0.000000e+00 : f32
    %126 = vector.shape_cast %8 : vector<1x256xi1> to vector<1x256xi1>
    %127 = vector.broadcast %126 : vector<1x256xi1> to vector<8x256xi1>
    %128 = vector.broadcast %cst_64 : f32 to vector<8x256xf32>
    %129 = arith.select %127, %125, %128 : vector<8x256xi1>, vector<8x256xf32>
    %c3_65 = arith.constant 3 : index
    %c0_66 = arith.constant 0 : index
    %c0_67 = arith.constant 0 : index
    %130 = vector.load %arg4[%c3_65, %c0_66, %c0_67] : memref<9x8x8xf32, #tpu.memory_space<vmem>>, vector<1x8x8xf32>
    %131 = vector.shape_cast %130 : vector<1x8x8xf32> to vector<8x8xf32>
    %cst_68 = arith.constant dense<0.000000e+00> : vector<8x256xf32>
    %132 = tpu.matmul %131, %129, %cst_68 {dimension_numbers = #tpu.dot_dimension_numbers<[1], [0], [0], [1], [0, 0, 1, 1], [], []>} : vector<8x8xf32>, vector<8x256xf32>, vector<8x256xf32> -> vector<8x256xf32>
    %133 = arith.addf %124, %132 : vector<8x256xf32>
    %c4_69 = arith.constant 4 : index
    %c0_70 = arith.constant 0 : index
    %c0_71 = arith.constant 0 : index
    %134 = vector.load %arg4[%c4_69, %c0_70, %c0_71] : memref<9x8x8xf32, #tpu.memory_space<vmem>>, vector<1x8x8xf32>
    %135 = vector.shape_cast %134 : vector<1x8x8xf32> to vector<8x8xf32>
    %cst_72 = arith.constant dense<0.000000e+00> : vector<8x256xf32>
    %136 = tpu.matmul %135, %96, %cst_72 {dimension_numbers = #tpu.dot_dimension_numbers<[1], [0], [0], [1], [0, 0, 1, 1], [], []>} : vector<8x8xf32>, vector<8x256xf32>, vector<8x256xf32> -> vector<8x256xf32>
    %137 = arith.addf %133, %136 : vector<8x256xf32>
    %c255_i32_73 = arith.constant 255 : i32
    %138 = tpu.dynamic_rotate %96 by %c255_i32_73 dim 1 : vector<8x256xf32>, i32 -> vector<8x256xf32>
    %cst_74 = arith.constant 0.000000e+00 : f32
    %139 = vector.shape_cast %10 : vector<1x256xi1> to vector<1x256xi1>
    %140 = vector.broadcast %139 : vector<1x256xi1> to vector<8x256xi1>
    %141 = vector.broadcast %cst_74 : f32 to vector<8x256xf32>
    %142 = arith.select %140, %138, %141 : vector<8x256xi1>, vector<8x256xf32>
    %c5_75 = arith.constant 5 : index
    %c0_76 = arith.constant 0 : index
    %c0_77 = arith.constant 0 : index
    %143 = vector.load %arg4[%c5_75, %c0_76, %c0_77] : memref<9x8x8xf32, #tpu.memory_space<vmem>>, vector<1x8x8xf32>
    %144 = vector.shape_cast %143 : vector<1x8x8xf32> to vector<8x8xf32>
    %cst_78 = arith.constant dense<0.000000e+00> : vector<8x256xf32>
    %145 = tpu.matmul %144, %142, %cst_78 {dimension_numbers = #tpu.dot_dimension_numbers<[1], [0], [0], [1], [0, 0, 1, 1], [], []>} : vector<8x8xf32>, vector<8x256xf32>, vector<8x256xf32> -> vector<8x256xf32>
    %146 = arith.addf %137, %145 : vector<8x256xf32>
    %c241_i32_79 = arith.constant 241 : i32
    %147 = tpu.dynamic_rotate %96 by %c241_i32_79 dim 1 : vector<8x256xf32>, i32 -> vector<8x256xf32>
    %148 = arith.andi %6, %8 : vector<1x256xi1>
    %cst_80 = arith.constant 0.000000e+00 : f32
    %149 = vector.shape_cast %148 : vector<1x256xi1> to vector<1x256xi1>
    %150 = vector.broadcast %149 : vector<1x256xi1> to vector<8x256xi1>
    %151 = vector.broadcast %cst_80 : f32 to vector<8x256xf32>
    %152 = arith.select %150, %147, %151 : vector<8x256xi1>, vector<8x256xf32>
    %c6_81 = arith.constant 6 : index
    %c0_82 = arith.constant 0 : index
    %c0_83 = arith.constant 0 : index
    %153 = vector.load %arg4[%c6_81, %c0_82, %c0_83] : memref<9x8x8xf32, #tpu.memory_space<vmem>>, vector<1x8x8xf32>
    %154 = vector.shape_cast %153 : vector<1x8x8xf32> to vector<8x8xf32>
    %cst_84 = arith.constant dense<0.000000e+00> : vector<8x256xf32>
    %155 = tpu.matmul %154, %152, %cst_84 {dimension_numbers = #tpu.dot_dimension_numbers<[1], [0], [0], [1], [0, 0, 1, 1], [], []>} : vector<8x8xf32>, vector<8x256xf32>, vector<8x256xf32> -> vector<8x256xf32>
    %156 = arith.addf %146, %155 : vector<8x256xf32>
    %c240_i32_85 = arith.constant 240 : i32
    %157 = tpu.dynamic_rotate %96 by %c240_i32_85 dim 1 : vector<8x256xf32>, i32 -> vector<8x256xf32>
    %cst_86 = arith.constant 0.000000e+00 : f32
    %158 = vector.shape_cast %6 : vector<1x256xi1> to vector<1x256xi1>
    %159 = vector.broadcast %158 : vector<1x256xi1> to vector<8x256xi1>
    %160 = vector.broadcast %cst_86 : f32 to vector<8x256xf32>
    %161 = arith.select %159, %157, %160 : vector<8x256xi1>, vector<8x256xf32>
    %c7_87 = arith.constant 7 : index
    %c0_88 = arith.constant 0 : index
    %c0_89 = arith.constant 0 : index
    %162 = vector.load %arg4[%c7_87, %c0_88, %c0_89] : memref<9x8x8xf32, #tpu.memory_space<vmem>>, vector<1x8x8xf32>
    %163 = vector.shape_cast %162 : vector<1x8x8xf32> to vector<8x8xf32>
    %cst_90 = arith.constant dense<0.000000e+00> : vector<8x256xf32>
    %164 = tpu.matmul %163, %161, %cst_90 {dimension_numbers = #tpu.dot_dimension_numbers<[1], [0], [0], [1], [0, 0, 1, 1], [], []>} : vector<8x8xf32>, vector<8x256xf32>, vector<8x256xf32> -> vector<8x256xf32>
    %165 = arith.addf %156, %164 : vector<8x256xf32>
    %c239_i32_91 = arith.constant 239 : i32
    %166 = tpu.dynamic_rotate %96 by %c239_i32_91 dim 1 : vector<8x256xf32>, i32 -> vector<8x256xf32>
    %167 = arith.andi %6, %10 : vector<1x256xi1>
    %cst_92 = arith.constant 0.000000e+00 : f32
    %168 = vector.shape_cast %167 : vector<1x256xi1> to vector<1x256xi1>
    %169 = vector.broadcast %168 : vector<1x256xi1> to vector<8x256xi1>
    %170 = vector.broadcast %cst_92 : f32 to vector<8x256xf32>
    %171 = arith.select %169, %166, %170 : vector<8x256xi1>, vector<8x256xf32>
    %c8_93 = arith.constant 8 : index
    %c0_94 = arith.constant 0 : index
    %c0_95 = arith.constant 0 : index
    %172 = vector.load %arg4[%c8_93, %c0_94, %c0_95] : memref<9x8x8xf32, #tpu.memory_space<vmem>>, vector<1x8x8xf32>
    %173 = vector.shape_cast %172 : vector<1x8x8xf32> to vector<8x8xf32>
    %cst_96 = arith.constant dense<0.000000e+00> : vector<8x256xf32>
    %174 = tpu.matmul %173, %171, %cst_96 {dimension_numbers = #tpu.dot_dimension_numbers<[1], [0], [0], [1], [0, 0, 1, 1], [], []>} : vector<8x8xf32>, vector<8x256xf32>, vector<8x256xf32> -> vector<8x256xf32>
    %175 = arith.addf %165, %174 : vector<8x256xf32>
    %c0_97 = arith.constant 0 : index
    %c0_98 = arith.constant 0 : index
    %176 = vector.load %arg5[%c0_97, %c0_98] : memref<8x1xf32, #tpu.memory_space<vmem>>, vector<8x1xf32>
    %177 = vector.broadcast %176 : vector<8x1xf32> to vector<8x256xf32>
    %178 = arith.addf %175, %177 : vector<8x256xf32>
    %cst_99 = arith.constant 0.000000e+00 : f32
    %179 = vector.broadcast %cst_99 : f32 to vector<8x256xf32>
    %180 = arith.maximumf %178, %179 : vector<8x256xf32>
    %c0_100 = arith.constant 0 : index
    %c0_101 = arith.constant 0 : index
    %c0_102 = arith.constant 0 : index
    %181 = vector.load %arg6[%c0_100, %c0_101, %c0_102] : memref<1x8x256xf32, #tpu.memory_space<vmem>>, vector<1x8x256xf32>
    %182 = vector.shape_cast %181 : vector<1x8x256xf32> to vector<8x256xf32>
    %183 = vector.shape_cast %180 : vector<8x256xf32> to vector<1x8x256xf32>
    tpu.vector_store %arg6[%c0_100, %c0_101, %c0_102], %183 {strides = array<i32>} : memref<1x8x256xf32, #tpu.memory_space<vmem>>, vector<1x8x256xf32>,
    return
  }
  func.func @transform_0(%arg0: i32) -> (i32, i32, i32) {
    %c0_i32 = arith.constant 0 : i32
    %c0_i32_0 = arith.constant 0 : i32
    %c0_i32_1 = arith.constant 0 : i32
    return %arg0, %c0_i32, %c0_i32_0 : i32, i32, i32
  }
  func.func @transform_1(%arg0: i32) -> (i32, i32, i32) {
    %c0_i32 = arith.constant 0 : i32
    %c0_i32_0 = arith.constant 0 : i32
    %c0_i32_1 = arith.constant 0 : i32
    %c0_i32_2 = arith.constant 0 : i32
    return %c0_i32, %c0_i32_0, %c0_i32_1 : i32, i32, i32
  }
  func.func @transform_2(%arg0: i32) -> (i32, i32) {
    %c0_i32 = arith.constant 0 : i32
    %c0_i32_0 = arith.constant 0 : i32
    %c0_i32_1 = arith.constant 0 : i32
    return %c0_i32, %c0_i32_0 : i32, i32
  }
  func.func @transform_3(%arg0: i32) -> (i32, i32, i32) {
    %c0_i32 = arith.constant 0 : i32
    %c0_i32_0 = arith.constant 0 : i32
    %c0_i32_1 = arith.constant 0 : i32
    %c0_i32_2 = arith.constant 0 : i32
    return %c0_i32, %c0_i32_0, %c0_i32_1 : i32, i32, i32
  }
  func.func @transform_4(%arg0: i32) -> (i32, i32) {
    %c0_i32 = arith.constant 0 : i32
    %c0_i32_0 = arith.constant 0 : i32
    %c0_i32_1 = arith.constant 0 : i32
    return %c0_i32, %c0_i32_0 : i32, i32
  }
  func.func @transform_5(%arg0: i32) -> (i32, i32, i32) {
    %c0_i32 = arith.constant 0 : i32
    %c0_i32_0 = arith.constant 0 : i32
    %c0_i32_1 = arith.constant 0 : i32
    return %arg0, %c0_i32, %c0_i32_0 : i32, i32, i32
  }
}

</mosaic_0001>

<llo_original>
// kernel: kan_double_conv_forward.1
$region0: #{kan_double_conv_forward.1}
  #allocation0 [shape = 'u32[]', space=smem, size = 0x4, offset = 0x4, fixed_abs, tag = 'smem constant byte address 0x4 - core index']
  #allocation1 [shape = 'u32[144,128]{1,0:T(1,128)}', space=vmem, size = 0x12000, scoped, tag = 'internal scratch']
  %s0 = inlined_call_operand.vmem [shape: f32[2,4,256], index: 0, kind: input, shape index: {}]
  %s1 = inlined_call_operand.vmem [shape: f32[9,8,4], index: 1, kind: input, shape index: {}]
  %s2 = inlined_call_operand.vmem [shape: f32[8,1], index: 2, kind: input, shape index: {}]
  %s3 = inlined_call_operand.vmem [shape: f32[9,8,8], index: 3, kind: input, shape index: {}]
  %s4 = inlined_call_operand.vmem [shape: f32[8,1], index: 4, kind: input, shape index: {}]
  %s5 = inlined_call_operand.vmem [shape: f32[2,8,256], index: 5, kind: output, shape index: {}]
  %s6 = sld [smem:[#allocation0]]
  $region53: #{kan_double_conv_forward.1} parent=0
    _
  %s8 = ssub.s32 1, %s6
  %s9 = scalar_select 0, %s8, %s6
  loop: start=0, step=1, limit=4
  $region2: #{kan_double_conv_forward.1} parent=0 // loop_pre_header
    _
  $region3: #{kan_double_conv_forward.1} parent=0 // loop_header
    %s11 = sphi 0, %s15
    %p12 = scmp.ge.s32.totalorder %s11, 4
    %s21 = sphi 0, %s23
    %s24 = sphi 0, %s21
    %s25 = sphi 0, %s24
    %s41 = sphi 0, %s25
    %s45 = sphi 0, %s45
    %s47 = sphi 0, %s45
    %s48 = sphi 0, %s47
    %s62 = sphi 0, %s48
    %s66 = sphi 0, %s66
    %s68 = sphi 0, %s66
    %s69 = sphi 0, %s68
    %s83 = sphi 0, %s69
    %s87 = sphi 0, %s87
    %s89 = sphi 0, %s87
    %s90 = sphi 0, %s89
    %s104 = sphi 0, %s90
    %s108 = sphi 0, %s108
    %s110 = sphi 0, %s108
    %s111 = sphi 0, %s110
    %s125 = sphi 0, %s111
    %s131 = sphi 0, %s133
    %s134 = sphi 0, %s131
    %s135 = sphi 0, %s134
    %s151 = sphi 0, %s135
  $region4: #{kan_double_conv_forward.1} parent=0 // loop_header_branch
    %14 = sbr.rel (%p12) target = $region8
  $region5: #{kan_double_conv_forward.1} parent=0 // loop_body
    %s16 = ssub.s32 %s11, 1
    %s17 = ssub.s32 %s11, 2
    %s18 = sadd.s32 %s11, 1
    %s19 = ssub.s32 %s11, %s18
    %p20 = scmp.eq.s32.totalorder %s19, 0
    %s22 = sadd.s32 %s21, 1
    %s23 = scalar_select %p20, %s21, %s22
    %p26 = pneg %p20
    %p27 = scmp.eq.s32.totalorder %s11, 1
    %p28 = por %p26, %p27
    %p29 = scmp.ne.s32.totalorder %s21, %s24
    %p30 = scmp.eq.s32.totalorder %s11, 0
    %p31 = por %p29, %p30
    %p32 = scmp.ne.s32.totalorder %s21, %s24
    %p33 = scmp.eq.s32.totalorder %s16, 1
    %p34 = por %p32, %p33
    %p35 = scmp.ne.s32.totalorder %s24, %s25
    %p36 = scmp.eq.s32.totalorder %s16, 0
    %p37 = por %p35, %p36
    %p38 = scmp.ne.s32.totalorder %s24, %s25
    %p39 = scmp.eq.s32.totalorder %s17, 1
    %p40 = por %p38, %p39
    %p42 = scmp.ne.s32.totalorder %s25, %s41
    %p43 = scmp.eq.s32.totalorder %s17, 0
    %p44 = por %p42, %p43
    %s46 = sadd.s32 %s45, 1
    %p49 = scmp.eq.s32.totalorder %s11, 1
    %p50 = scmp.ne.s32.totalorder %s45, %s47
    %p51 = scmp.eq.s32.totalorder %s11, 0
    %p52 = por %p50, %p51
    %p53 = scmp.ne.s32.totalorder %s45, %s47
    %p54 = scmp.eq.s32.totalorder %s16, 1
    %p55 = por %p53, %p54
    %p56 = scmp.ne.s32.totalorder %s47, %s48
    %p57 = scmp.eq.s32.totalorder %s16, 0
    %p58 = por %p56, %p57
    %p59 = scmp.ne.s32.totalorder %s47, %s48
    %p60 = scmp.eq.s32.totalorder %s17, 1
    %p61 = por %p59, %p60
    %p63 = scmp.ne.s32.totalorder %s48, %s62
    %p64 = scmp.eq.s32.totalorder %s17, 0
    %p65 = por %p63, %p64
    %s67 = sadd.s32 %s66, 1
    %p70 = scmp.eq.s32.totalorder %s11, 1
    %p71 = scmp.ne.s32.totalorder %s66, %s68
    %p72 = scmp.eq.s32.totalorder %s11, 0
    %p73 = por %p71, %p72
    %p74 = scmp.ne.s32.totalorder %s66, %s68
    %p75 = scmp.eq.s32.totalorder %s16, 1
    %p76 = por %p74, %p75
    %p77 = scmp.ne.s32.totalorder %s68, %s69
    %p78 = scmp.eq.s32.totalorder %s16, 0
    %p79 = por %p77, %p78
    %p80 = scmp.ne.s32.totalorder %s68, %s69
    %p81 = scmp.eq.s32.totalorder %s17, 1
    %p82 = por %p80, %p81
    %p84 = scmp.ne.s32.totalorder %s69, %s83
    %p85 = scmp.eq.s32.totalorder %s17, 0
    %p86 = por %p84, %p85
    %s88 = sadd.s32 %s87, 1
    %p91 = scmp.eq.s32.totalorder %s11, 1
    %p92 = scmp.ne.s32.totalorder %s87, %s89
    %p93 = scmp.eq.s32.totalorder %s11, 0
    %p94 = por %p92, %p93
    %p95 = scmp.ne.s32.totalorder %s87, %s89
    %p96 = scmp.eq.s32.totalorder %s16, 1
    %p97 = por %p95, %p96
    %p98 = scmp.ne.s32.totalorder %s89, %s90
    %p99 = scmp.eq.s32.totalorder %s16, 0
    %p100 = por %p98, %p99
    %p101 = scmp.ne.s32.totalorder %s89, %s90
    %p102 = scmp.eq.s32.totalorder %s17, 1
    %p103 = por %p101, %p102
    %p105 = scmp.ne.s32.totalorder %s90, %s104
    %p106 = scmp.eq.s32.totalorder %s17, 0
    %p107 = por %p105, %p106
    %s109 = sadd.s32 %s108, 1
    %p112 = scmp.eq.s32.totalorder %s11, 1
    %p113 = scmp.ne.s32.totalorder %s108, %s110
    %p114 = scmp.eq.s32.totalorder %s11, 0
    %p115 = por %p113, %p114
    %p116 = scmp.ne.s32.totalorder %s108, %s110
    %p117 = scmp.eq.s32.totalorder %s16, 1
    %p118 = por %p116, %p117
    %p119 = scmp.ne.s32.totalorder %s110, %s111
    %p120 = scmp.eq.s32.totalorder %s16, 0
    %p121 = por %p119, %p120
    %p122 = scmp.ne.s32.totalorder %s110, %s111
    %p123 = scmp.eq.s32.totalorder %s17, 1
    %p124 = por %p122, %p123
    %p126 = scmp.ne.s32.totalorder %s111, %s125
    %p127 = scmp.eq.s32.totalorder %s17, 0
    %p128 = por %p126, %p127
    %s129 = ssub.s32 %s11, %s18
    %p130 = scmp.eq.s32.totalorder %s129, 0
    %s132 = sadd.s32 %s131, 1
    %s133 = scalar_select %p130, %s131, %s132
    %p136 = pneg %p130
    %p137 = scmp.eq.s32.totalorder %s11, 1
    %p138 = por %p136, %p137
    %p139 = scmp.ne.s32.totalorder %s131, %s134
    %p140 = scmp.eq.s32.totalorder %s11, 0
    %p141 = por %p139, %p140
    %p142 = scmp.ne.s32.totalorder %s131, %s134
    %p143 = scmp.eq.s32.totalorder %s16, 1
    %p144 = por %p142, %p143
    %p145 = scmp.ne.s32.totalorder %s134, %s135
    %p146 = scmp.eq.s32.totalorder %s16, 0
    %p147 = por %p145, %p146
    %p148 = scmp.ne.s32.totalorder %s134, %s135
    %p149 = scmp.eq.s32.totalorder %s17, 1
    %p150 = por %p148, %p149
    %p152 = scmp.ne.s32.totalorder %s135, %s151
    %p153 = scmp.eq.s32.totalorder %s17, 0
    %p154 = por %p152, %p153
    %p155 = scmp.le.s32.totalorder 1, %s11
    %p156 = scmp.lt.s32.totalorder %s11, 3
    %p157 = pnand %p155, %p156
    %p158 = pneg %p157
    // Predicated region
    $region9: #{kan_double_conv_forward.1} parent=5 // pred_check
      _
    $region10: #{kan_double_conv_forward.1} parent=5 // pred_check_branch
      %160 = sbr.rel (%p157) target = $region12
    $region11: #{kan_double_conv_forward.1} parent=5 // pred_region
      %s161 = ssub.s32 %s11, 1
      // Predicated region
      $region13: #{kan_double_conv_forward.1} parent=11 // pred_check
        %p162 = pneg %p58
      $region14: #{kan_double_conv_forward.1} parent=11 // pred_check_branch
        %164 = sbr.rel (%p162) target = $region16
      $region15: #{kan_double_conv_forward.1} parent=11 // pred_region
        _
      $region16: #{kan_double_conv_forward.1} parent=11 // pred_fallthru
        _
      // Predicated region
      $region17: #{kan_double_conv_forward.1} parent=11 // pred_check
        %p165 = pneg %p79
      $region18: #{kan_double_conv_forward.1} parent=11 // pred_check_branch
        %167 = sbr.rel (%p165) target = $region20
      $region19: #{kan_double_conv_forward.1} parent=11 // pred_region
        _
      $region20: #{kan_double_conv_forward.1} parent=11 // pred_fallthru
        _
      // Predicated region
      $region21: #{kan_double_conv_forward.1} parent=11 // pred_check
        %p168 = pneg %p100
      $region22: #{kan_double_conv_forward.1} parent=11 // pred_check_branch
        %170 = sbr.rel (%p168) target = $region24
      $region23: #{kan_double_conv_forward.1} parent=11 // pred_region
        _
      $region24: #{kan_double_conv_forward.1} parent=11 // pred_fallthru
        _
      // Predicated region
      $region25: #{kan_double_conv_forward.1} parent=11 // pred_check
        %p171 = pneg %p121
      $region26: #{kan_double_conv_forward.1} parent=11 // pred_check_branch
        %173 = sbr.rel (%p171) target = $region28
      $region27: #{kan_double_conv_forward.1} parent=11 // pred_region
        _
      $region28: #{kan_double_conv_forward.1} parent=11 // pred_fallthru
        _
    $region12: #{kan_double_conv_forward.1} parent=5 // pred_fallthru
      _
    %p174 = scmp.lt.s32.totalorder %s11, 2
    // Predicated region
    $region29: #{kan_double_conv_forward.1} parent=5 // pred_check
      %p175 = pneg %p174
    $region30: #{kan_double_conv_forward.1} parent=5 // pred_check_branch
      %177 = sbr.rel (%p175) target = $region32
    $region31: #{kan_double_conv_forward.1} parent=5 // pred_region
      // Predicated region
      $region33: #{kan_double_conv_forward.1} parent=31 // pred_check
        %p178 = pneg %p31
      $region34: #{kan_double_conv_forward.1} parent=31 // pred_check_branch
        %180 = sbr.rel (%p178) target = $region36
      $region35: #{kan_double_conv_forward.1} parent=31 // pred_region
        %p181 = scmp.lt.s32.totalorder %s11, 1
        %s182 = scalar_select %p181, %s11, 1
        %s183 = smul.addr %s182, 2
        %s184 = smul.addr %s183, 4
        %s185 = scalar_lea.vmem %s0, %s184
      $region36: #{kan_double_conv_forward.1} parent=31 // pred_fallthru
        _
    $region32: #{kan_double_conv_forward.1} parent=5 // pred_fallthru
      _
    %p186 = scmp.le.s32.totalorder 1, %s11
    %p187 = scmp.lt.s32.totalorder %s11, 3
    %p188 = pnand %p186, %p187
    %p189 = pneg %p188
    // Predicated region
    $region37: #{kan_double_conv_forward.1} parent=5 // pred_check
      _
    $region38: #{kan_double_conv_forward.1} parent=5 // pred_check_branch
      %191 = sbr.rel (%p188) target = $region40
    $region39: #{kan_double_conv_forward.1} parent=5 // pred_region
      %s192 = ssub.s32 %s11, 1
      %p193 = scmp.lt.s32.totalorder %s16, 1
      %s194 = scalar_select %p193, %s16, 1
      %s195 = smul.addr %s194, 2
      %s196 = smul.addr %s195, 4
      %s197 = scalar_lea.vmem %s0, %s196
      %p198 = pneg %p37
      %p199 = pneg %p34
      %p200 = pneg %p58
      %p201 = pneg %p55
      %p202 = pneg %p79
      %p203 = pneg %p76
      %p204 = pneg %p100
      %p205 = pneg %p97
      %p206 = pneg %p121
      %p207 = pneg %p118
      %p208 = pneg %p147
      %p209 = pneg %p144
      %p210 = scmp.lt.s32.totalorder %s16, 1
      %s211 = scalar_select %p210, %s16, 1
      %s212 = smul.addr %s211, 2
      %s213 = smul.addr %s212, 8
      %s214 = scalar_lea.vmem %s5, %s213
      %p215 = scmp.lt.s32.totalorder %s16, 1
      %s216 = scalar_select %p215, %s16, 1
      %s217 = smul.addr %s216, 2
      %s218 = smul.addr %s217, 4
      %s219 = scalar_lea.vmem %s0, %s218
      %p220 = scmp.lt.s32.totalorder %s16, 1
      %s221 = scalar_select %p220, %s16, 1
      %s222 = smul.addr %s221, 2
      %s223 = smul.addr %s222, 8
      %s224 = scalar_lea.vmem %s5, %s223
      %v225 = vlaneseq
      %v226 = vand.u32 %v225, 127
      %v227 = vadd.s32 %v226, 128
      %v228 = vand.u32 %v226, 15
      %v229 = vand.u32 %v227, 15
      %vm230 = vcmp.ge.s32.totalorder %v226, 16
      %vm231 = vcmp.ge.s32.totalorder %v227, 16
      %vm232 = vcmp.lt.s32.totalorder %v226, 240
      %vm233 = vcmp.lt.s32.totalorder %v227, 240
      %vm234 = vcmp.ge.s32.totalorder %v228, 1
      %vm235 = vcmp.ge.s32.totalorder %v229, 1
      %vm236 = vcmp.lt.s32.totalorder %v228, 15
      %vm237 = vcmp.lt.s32.totalorder %v229, 15
      %v238 = vld [vmem:[%s219] sm:$0xff]
      %v240 = vcombine.high %v238, %v238
      %242 = vrot.lane.b32.xlu0 %v238, 17
      %v243 = vpop.permute.xlu0 %242
      %244 = vrot.lane.b32.xlu0 %v240, 17
      %v245 = vpop.permute.xlu0 %244
      %vm246 = vcmp.lt.s32.totalorder %v226, 17
      %v247 = vsel %vm246, %v243, %v245
      %v248 = vsel %vm246, %v245, %v243
      %vm249 = vmand %vm230, %vm234
      %vm250 = vmand %vm231, %vm235
      %v251 = vsel %vm249, 1, 0
      %v252 = vsel %vm250, 1, 0
      %vm253 = vcmp.eq.s32.totalorder %v251, 1
      %vm254 = vcmp.eq.s32.totalorder %v252, 1
      %v255 = vsel %vm253, %v248, 0.0
      %v256 = vsel %vm254, %v247, 0.0
      %v257 = vld [vmem:[%s1] sm:$0xff]
      %258 = vrot.lane.b32.xlu0 %v238, 16
      %v259 = vpop.permute.xlu0 %258
      %260 = vrot.lane.b32.xlu0 %v240, 16
      %v261 = vpop.permute.xlu0 %260
      %vm262 = vcmp.lt.s32.totalorder %v226, 16
      %v263 = vsel %vm262, %v259, %v261
      %v264 = vsel %vm262, %v261, %v259
      %v265 = vsel %vm230, 1, 0
      %v266 = vsel %vm231, 1, 0
      %vm267 = vcmp.eq.s32.totalorder %v265, 1
      %vm268 = vcmp.eq.s32.totalorder %v266, 1
      %v269 = vsel %vm267, %v264, 0.0
      %v270 = vsel %vm268, %v263, 0.0
      %s271 = scalar_lea.vmem %s1, 8
      %v272 = vld [vmem:[%s271] sm:$0xff]
      %vm273 = vcmask 31744
      %v275 = vsel %vm273, %v272, 0
      %vm277 = vcmask 1043456
      %v279 = vsel %vm277, %v269, 0
      %v282 = vsel %vm277, %v270, 0
      %284 = vmatprep.subr.mxu0 0.0
      %285 = vmatpush1.msra.mxu0 0.0
      %286 = vmatprep.subr.mxu0 0.0
      %287 = vmatpush1.msra.mxu0 0.0
      %288 = vmatprep.subr.mxu0 0.0
      %289 = vmatpush1.msra.mxu0 0.0
      %290 = vmatprep.subr.mxu0 0.0
      %291 = vmatpush1.msra.mxu0 0.0
      %292 = vmatprep.subr.mxu0 0.0
      %293 = vmatpush1.msra.mxu0 0.0
      %294 = vmatprep.subr.mxu0 0.0
      %295 = vmatpush1.msra.mxu0 0.0
      %296 = vmatprep.subr.mxu0 0.0
      %297 = vmatpush1.msra.mxu0 0.0
      %298 = vmatprep.subr.mxu0 0.0
      %299 = vmatpush1.msra.mxu0 0.0
      %300 = vmatprep.subr.mxu0 0.0
      %301 = vmatpush1.msra.mxu0 0.0
      %302 = vmatprep.subr.mxu0 0.0
      %303 = vmatpush1.msra.mxu0 0.0
      %304 = vmatprep.subr.mxu0 0.0
      %305 = vmatpush1.msra.mxu0 0.0
      %306 = vmatprep.subr.mxu0 0.0
      %307 = vmatpush1.msra.mxu0 0.0
      %308 = vmatprep.subr.mxu0 0.0
      %309 = vmatpush1.msra.mxu0 0.0
      %310 = vmatprep.subr.mxu0 0.0
      %311 = vmatpush1.msra.mxu0 0.0
      %312 = vmatprep.subr.mxu0 0.0
      %313 = vmatpush1.msra.mxu0 0.0
      %314 = vmatprep.subr.mxu0 %v282
      %315 = vmatpush1.msra.mxu0 %v279
      %316 = vmatprep.subr.mxu0 0.0
      %317 = vmatpush2.msra.mxu0 0.0
      %318 = vmatprep.subr.mxu0 0.0
      %319 = vmatpush2.msra.mxu0 0.0
      %320 = vmatprep.subr.mxu0 0.0
      %321 = vmatpush2.msra.mxu0 0.0
      %322 = vmatprep.subr.mxu0 0.0
      %323 = vmatpush2.msra.mxu0 0.0
      %324 = vmatprep.subr.mxu0 0.0
      %325 = vmatpush2.msra.mxu0 0.0
      %326 = vmatprep.subr.mxu0 0.0
      %327 = vmatpush2.msra.mxu0 0.0
      %328 = vmatprep.subr.mxu0 0.0
      %329 = vmatpush2.msra.mxu0 0.0
      %330 = vmatprep.subr.mxu0 0.0
      %331 = vmatpush2.msra.mxu0 0.0
      %332 = vmatprep.subr.mxu0 0.0
      %333 = vmatpush2.msra.mxu0 0.0
      %334 = vmatprep.subr.mxu0 0.0
      %335 = vmatpush2.msra.mxu0 0.0
      %336 = vmatprep.subr.mxu0 0.0
      %337 = vmatpush2.msra.mxu0 0.0
      %338 = vmatprep.subr.mxu0 0.0
      %339 = vmatpush2.msra.mxu0 0.0
      %340 = vmatprep.subr.mxu0 0.0
      %341 = vmatpush2.msra.mxu0 0.0
      %342 = vmatprep.subr.mxu0 0.0
      %343 = vmatpush2.msra.mxu0 0.0
      %344 = vmatprep.subr.mxu0 0.0
      %345 = vmatpush2.msra.mxu0 0.0
      %346 = vmatprep.subr.mxu0 0.0
      %347 = vmatpush2.msra.mxu0 0.0
      %348 = vmatprep.mubr.f32.mxu0 0.0
      %349 = vmatmul.mubr.f32.gmra.mxu0 %v275
      %v350 = vpop.f32.mrf.mxu0
      %v351 = vadd.f32 0.0, %v350
      %v352 = vpop.f32.mrf.mxu0
      %v353 = vadd.f32 0.0, %v352
      %354 = vdwg.mxu0
      %v356 = vsel %vm273, %v257, 0
      %v359 = vsel %vm277, %v255, 0
      %v362 = vsel %vm277, %v256, 0
      %364 = vmatprep.subr.mxu0 0.0
      %365 = vmatpush1.msra.mxu0 0.0
      %366 = vmatprep.subr.mxu0 0.0
      %367 = vmatpush1.msra.mxu0 0.0
      %368 = vmatprep.subr.mxu0 0.0
      %369 = vmatpush1.msra.mxu0 0.0
      %370 = vmatprep.subr.mxu0 0.0
      %371 = vmatpush1.msra.mxu0 0.0
      %372 = vmatprep.subr.mxu0 0.0
      %373 = vmatpush1.msra.mxu0 0.0
      %374 = vmatprep.subr.mxu0 0.0
      %375 = vmatpush1.msra.mxu0 0.0
      %376 = vmatprep.subr.mxu0 0.0
      %377 = vmatpush1.msra.mxu0 0.0
      %378 = vmatprep.subr.mxu0 0.0
      %379 = vmatpush1.msra.mxu0 0.0
      %380 = vmatprep.subr.mxu0 0.0
      %381 = vmatpush1.msra.mxu0 0.0
      %382 = vmatprep.subr.mxu0 0.0
      %383 = vmatpush1.msra.mxu0 0.0
      %384 = vmatprep.subr.mxu0 0.0
      %385 = vmatpush1.msra.mxu0 0.0
      %386 = vmatprep.subr.mxu0 0.0
      %387 = vmatpush1.msra.mxu0 0.0
      %388 = vmatprep.subr.mxu0 0.0
      %389 = vmatpush1.msra.mxu0 0.0
      %390 = vmatprep.subr.mxu0 0.0
      %391 = vmatpush1.msra.mxu0 0.0
      %392 = vmatprep.subr.mxu0 0.0
      %393 = vmatpush1.msra.mxu0 0.0
      %394 = vmatprep.subr.mxu0 %v362
      %395 = vmatpush1.msra.mxu0 %v359
      %396 = vmatprep.subr.mxu0 0.0
      %397 = vmatpush2.msra.mxu0 0.0
      %398 = vmatprep.subr.mxu0 0.0
      %399 = vmatpush2.msra.mxu0 0.0
      %400 = vmatprep.subr.mxu0 0.0
      %401 = vmatpush2.msra.mxu0 0.0
      %402 = vmatprep.subr.mxu0 0.0
      %403 = vmatpush2.msra.mxu0 0.0
      %404 = vmatprep.subr.mxu0 0.0
      %405 = vmatpush2.msra.mxu0 0.0
      %406 = vmatprep.subr.mxu0 0.0
      %407 = vmatpush2.msra.mxu0 0.0
      %408 = vmatprep.subr.mxu0 0.0
      %409 = vmatpush2.msra.mxu0 0.0
      %410 = vmatprep.subr.mxu0 0.0
      %411 = vmatpush2.msra.mxu0 0.0
      %412 = vmatprep.subr.mxu0 0.0
      %413 = vmatpush2.msra.mxu0 0.0
      %414 = vmatprep.subr.mxu0 0.0
      %415 = vmatpush2.msra.mxu0 0.0
      %416 = vmatprep.subr.mxu0 0.0
      %417 = vmatpush2.msra.mxu0 0.0
      %418 = vmatprep.subr.mxu0 0.0
      %419 = vmatpush2.msra.mxu0 0.0
      %420 = vmatprep.subr.mxu0 0.0
      %421 = vmatpush2.msra.mxu0 0.0
      %422 = vmatprep.subr.mxu0 0.0
      %423 = vmatpush2.msra.mxu0 0.0
      %424 = vmatprep.subr.mxu0 0.0
      %425 = vmatpush2.msra.mxu0 0.0
      %426 = vmatprep.subr.mxu0 0.0
      %427 = vmatpush2.msra.mxu0 0.0
      %428 = vmatprep.mubr.f32.mxu0 0.0
      %429 = vmatmul.mubr.f32.gmra.mxu0 %v356
      %v430 = vpop.f32.mrf.mxu0
      %v431 = vadd.f32 %v351, %v430
      %v432 = vpop.f32.mrf.mxu0
      %v433 = vadd.f32 %v353, %v432
      %434 = vdwg.mxu0
      %435 = vrot.lane.b32.xlu0 %v238, 15
      %v436 = vpop.permute.xlu0 %435
      %437 = vrot.lane.b32.xlu0 %v240, 15
      %v438 = vpop.permute.xlu0 %437
      %vm439 = vcmp.lt.s32.totalorder %v226, 15
      %v440 = vsel %vm439, %v436, %v438
      %v441 = vsel %vm439, %v438, %v436
      %vm442 = vmand %vm230, %vm236
      %vm443 = vmand %vm231, %vm237
      %v444 = vsel %vm442, 1, 0
      %v445 = vsel %vm443, 1, 0
      %vm446 = vcmp.eq.s32.totalorder %v444, 1
      %vm447 = vcmp.eq.s32.totalorder %v445, 1
      %v448 = vsel %vm446, %v441, 0.0
      %v449 = vsel %vm447, %v440, 0.0
      %s450 = scalar_lea.vmem %s1, 16
      %v451 = vld [vmem:[%s450] sm:$0xff]
      %v453 = vsel %vm273, %v451, 0
      %v456 = vsel %vm277, %v448, 0
      %v459 = vsel %vm277, %v449, 0
      %461 = vmatprep.subr.mxu0 0.0
      %462 = vmatpush1.msra.mxu0 0.0
      %463 = vmatprep.subr.mxu0 0.0
      %464 = vmatpush1.msra.mxu0 0.0
      %465 = vmatprep.subr.mxu0 0.0
      %466 = vmatpush1.msra.mxu0 0.0
      %467 = vmatprep.subr.mxu0 0.0
      %468 = vmatpush1.msra.mxu0 0.0
      %469 = vmatprep.subr.mxu0 0.0
      %470 = vmatpush1.msra.mxu0 0.0
      %471 = vmatprep.subr.mxu0 0.0
      %472 = vmatpush1.msra.mxu0 0.0
      %473 = vmatprep.subr.mxu0 0.0
      %474 = vmatpush1.msra.mxu0 0.0
      %475 = vmatprep.subr.mxu0 0.0
      %476 = vmatpush1.msra.mxu0 0.0
      %477 = vmatprep.subr.mxu0 0.0
      %478 = vmatpush1.msra.mxu0 0.0
      %479 = vmatprep.subr.mxu0 0.0
      %480 = vmatpush1.msra.mxu0 0.0
      %481 = vmatprep.subr.mxu0 0.0
      %482 = vmatpush1.msra.mxu0 0.0
      %483 = vmatprep.subr.mxu0 0.0
      %484 = vmatpush1.msra.mxu0 0.0
      %485 = vmatprep.subr.mxu0 0.0
      %486 = vmatpush1.msra.mxu0 0.0
      %487 = vmatprep.subr.mxu0 0.0
      %488 = vmatpush1.msra.mxu0 0.0
      %489 = vmatprep.subr.mxu0 0.0
      %490 = vmatpush1.msra.mxu0 0.0
      %491 = vmatprep.subr.mxu0 %v459
      %492 = vmatpush1.msra.mxu0 %v456
      %493 = vmatprep.subr.mxu0 0.0
      %494 = vmatpush2.msra.mxu0 0.0
      %495 = vmatprep.subr.mxu0 0.0
      %496 = vmatpush2.msra.mxu0 0.0
      %497 = vmatprep.subr.mxu0 0.0
      %498 = vmatpush2.msra.mxu0 0.0
      %499 = vmatprep.subr.mxu0 0.0
      %500 = vmatpush2.msra.mxu0 0.0
      %501 = vmatprep.subr.mxu0 0.0
      %502 = vmatpush2.msra.mxu0 0.0
      %503 = vmatprep.subr.mxu0 0.0
      %504 = vmatpush2.msra.mxu0 0.0
      %505 = vmatprep.subr.mxu0 0.0
      %506 = vmatpush2.msra.mxu0 0.0
      %507 = vmatprep.subr.mxu0 0.0
      %508 = vmatpush2.msra.mxu0 0.0
      %509 = vmatprep.subr.mxu0 0.0
      %510 = vmatpush2.msra.mxu0 0.0
      %511 = vmatprep.subr.mxu0 0.0
      %512 = vmatpush2.msra.mxu0 0.0
      %513 = vmatprep.subr.mxu0 0.0
      %514 = vmatpush2.msra.mxu0 0.0
      %515 = vmatprep.subr.mxu0 0.0
      %516 = vmatpush2.msra.mxu0 0.0
      %517 = vmatprep.subr.mxu0 0.0
      %518 = vmatpush2.msra.mxu0 0.0
      %519 = vmatprep.subr.mxu0 0.0
      %520 = vmatpush2.msra.mxu0 0.0
      %521 = vmatprep.subr.mxu0 0.0
      %522 = vmatpush2.msra.mxu0 0.0
      %523 = vmatprep.subr.mxu0 0.0
      %524 = vmatpush2.msra.mxu0 0.0
      %525 = vmatprep.mubr.f32.mxu0 0.0
      %526 = vmatmul.mubr.f32.gmra.mxu0 %v453
      %v527 = vpop.f32.mrf.mxu0
      %v528 = vadd.f32 0.0, %v527
      %v529 = vpop.f32.mrf.mxu0
      %v530 = vadd.f32 0.0, %v529
      %531 = vdwg.mxu0
      %v532 = vadd.f32 %v431, %v528
      %v533 = vadd.f32 %v433, %v530
      %534 = vrot.lane.b32.xlu0 %v238, 1
      %v535 = vpop.permute.xlu0 %534
      %536 = vrot.lane.b32.xlu0 %v240, 1
      %v537 = vpop.permute.xlu0 %536
      %vm538 = vcmp.lt.s32.totalorder %v226, 1
      %v539 = vsel %vm538, %v535, %v537
      %v540 = vsel %vm538, %v537, %v535
      %v541 = vsel %vm234, 1, 0
      %v542 = vsel %vm235, 1, 0
      %vm543 = vcmp.eq.s32.totalorder %v541, 1
      %vm544 = vcmp.eq.s32.totalorder %v542, 1
      %v545 = vsel %vm543, %v540, 0.0
      %v546 = vsel %vm544, %v539, 0.0
      %s547 = scalar_lea.vmem %s1, 24
      %v548 = vld [vmem:[%s547] sm:$0xff]
      %v550 = vsel %vm273, %v548, 0
      %v553 = vsel %vm277, %v545, 0
      %v556 = vsel %vm277, %v546, 0
      %558 = vmatprep.subr.mxu0 0.0
      %559 = vmatpush1.msra.mxu0 0.0
      %560 = vmatprep.subr.mxu0 0.0
      %561 = vmatpush1.msra.mxu0 0.0
      %562 = vmatprep.subr.mxu0 0.0
      %563 = vmatpush1.msra.mxu0 0.0
      %564 = vmatprep.subr.mxu0 0.0
      %565 = vmatpush1.msra.mxu0 0.0
      %566 = vmatprep.subr.mxu0 0.0
      %567 = vmatpush1.msra.mxu0 0.0
      %568 = vmatprep.subr.mxu0 0.0
      %569 = vmatpush1.msra.mxu0 0.0
      %570 = vmatprep.subr.mxu0 0.0
      %571 = vmatpush1.msra.mxu0 0.0
      %572 = vmatprep.subr.mxu0 0.0
      %573 = vmatpush1.msra.mxu0 0.0
      %574 = vmatprep.subr.mxu0 0.0
      %575 = vmatpush1.msra.mxu0 0.0
      %576 = vmatprep.subr.mxu0 0.0
      %577 = vmatpush1.msra.mxu0 0.0
      %578 = vmatprep.subr.mxu0 0.0
      %579 = vmatpush1.msra.mxu0 0.0
      %580 = vmatprep.subr.mxu0 0.0
      %581 = vmatpush1.msra.mxu0 0.0
      %582 = vmatprep.subr.mxu0 0.0
      %583 = vmatpush1.msra.mxu0 0.0
      %584 = vmatprep.subr.mxu0 0.0
      %585 = vmatpush1.msra.mxu0 0.0
      %586 = vmatprep.subr.mxu0 0.0
      %587 = vmatpush1.msra.mxu0 0.0
      %588 = vmatprep.subr.mxu0 %v556
      %589 = vmatpush1.msra.mxu0 %v553
      %590 = vmatprep.subr.mxu0 0.0
      %591 = vmatpush2.msra.mxu0 0.0
      %592 = vmatprep.subr.mxu0 0.0
      %593 = vmatpush2.msra.mxu0 0.0
      %594 = vmatprep.subr.mxu0 0.0
      %595 = vmatpush2.msra.mxu0 0.0
      %596 = vmatprep.subr.mxu0 0.0
      %597 = vmatpush2.msra.mxu0 0.0
      %598 = vmatprep.subr.mxu0 0.0
      %599 = vmatpush2.msra.mxu0 0.0
      %600 = vmatprep.subr.mxu0 0.0
      %601 = vmatpush2.msra.mxu0 0.0
      %602 = vmatprep.subr.mxu0 0.0
      %603 = vmatpush2.msra.mxu0 0.0
      %604 = vmatprep.subr.mxu0 0.0
      %605 = vmatpush2.msra.mxu0 0.0
      %606 = vmatprep.subr.mxu0 0.0
      %607 = vmatpush2.msra.mxu0 0.0
      %608 = vmatprep.subr.mxu0 0.0
      %609 = vmatpush2.msra.mxu0 0.0
      %610 = vmatprep.subr.mxu0 0.0
      %611 = vmatpush2.msra.mxu0 0.0
      %612 = vmatprep.subr.mxu0 0.0
      %613 = vmatpush2.msra.mxu0 0.0
      %614 = vmatprep.subr.mxu0 0.0
      %615 = vmatpush2.msra.mxu0 0.0
      %616 = vmatprep.subr.mxu0 0.0
      %617 = vmatpush2.msra.mxu0 0.0
      %618 = vmatprep.subr.mxu0 0.0
      %619 = vmatpush2.msra.mxu0 0.0
      %620 = vmatprep.subr.mxu0 0.0
      %621 = vmatpush2.msra.mxu0 0.0
      %622 = vmatprep.mubr.f32.mxu0 0.0
      %623 = vmatmul.mubr.f32.gmra.mxu0 %v550
      %v624 = vpop.f32.mrf.mxu0
      %v625 = vadd.f32 0.0, %v624
      %v626 = vpop.f32.mrf.mxu0
      %v627 = vadd.f32 0.0, %v626
      %628 = vdwg.mxu0
      %v629 = vadd.f32 %v532, %v625
      %v630 = vadd.f32 %v533, %v627
      %s631 = scalar_lea.vmem %s1, 32
      %v632 = vld [vmem:[%s631] sm:$0xff]
      %v634 = vsel %vm273, %v632, 0
      %v636 = vsel %vm277, %v238, 0
      %v638 = vsel %vm277, %v240, 0
      %640 = vmatprep.subr.mxu0 0.0
      %641 = vmatpush1.msra.mxu0 0.0
      %642 = vmatprep.subr.mxu0 0.0
      %643 = vmatpush1.msra.mxu0 0.0
      %644 = vmatprep.subr.mxu0 0.0
      %645 = vmatpush1.msra.mxu0 0.0
      %646 = vmatprep.subr.mxu0 0.0
      %647 = vmatpush1.msra.mxu0 0.0
      %648 = vmatprep.subr.mxu0 0.0
      %649 = vmatpush1.msra.mxu0 0.0
      %650 = vmatprep.subr.mxu0 0.0
      %651 = vmatpush1.msra.mxu0 0.0
      %652 = vmatprep.subr.mxu0 0.0
      %653 = vmatpush1.msra.mxu0 0.0
      %654 = vmatprep.subr.mxu0 0.0
      %655 = vmatpush1.msra.mxu0 0.0
      %656 = vmatprep.subr.mxu0 0.0
      %657 = vmatpush1.msra.mxu0 0.0
      %658 = vmatprep.subr.mxu0 0.0
      %659 = vmatpush1.msra.mxu0 0.0
      %660 = vmatprep.subr.mxu0 0.0
      %661 = vmatpush1.msra.mxu0 0.0
      %662 = vmatprep.subr.mxu0 0.0
      %663 = vmatpush1.msra.mxu0 0.0
      %664 = vmatprep.subr.mxu0 0.0
      %665 = vmatpush1.msra.mxu0 0.0
      %666 = vmatprep.subr.mxu0 0.0
      %667 = vmatpush1.msra.mxu0 0.0
      %668 = vmatprep.subr.mxu0 0.0
      %669 = vmatpush1.msra.mxu0 0.0
      %670 = vmatprep.subr.mxu0 %v638
      %671 = vmatpush1.msra.mxu0 %v636
      %672 = vmatprep.subr.mxu0 0.0
      %673 = vmatpush2.msra.mxu0 0.0
      %674 = vmatprep.subr.mxu0 0.0
      %675 = vmatpush2.msra.mxu0 0.0
      %676 = vmatprep.subr.mxu0 0.0
      %677 = vmatpush2.msra.mxu0 0.0
      %678 = vmatprep.subr.mxu0 0.0
      %679 = vmatpush2.msra.mxu0 0.0
      %680 = vmatprep.subr.mxu0 0.0
      %681 = vmatpush2.msra.mxu0 0.0
      %682 = vmatprep.subr.mxu0 0.0
      %683 = vmatpush2.msra.mxu0 0.0
      %684 = vmatprep.subr.mxu0 0.0
      %685 = vmatpush2.msra.mxu0 0.0
      %686 = vmatprep.subr.mxu0 0.0
      %687 = vmatpush2.msra.mxu0 0.0
      %688 = vmatprep.subr.mxu0 0.0
      %689 = vmatpush2.msra.mxu0 0.0
      %690 = vmatprep.subr.mxu0 0.0
      %691 = vmatpush2.msra.mxu0 0.0
      %692 = vmatprep.subr.mxu0 0.0
      %693 = vmatpush2.msra.mxu0 0.0
      %694 = vmatprep.subr.mxu0 0.0
      %695 = vmatpush2.msra.mxu0 0.0
      %696 = vmatprep.subr.mxu0 0.0
      %697 = vmatpush2.msra.mxu0 0.0
      %698 = vmatprep.subr.mxu0 0.0
      %699 = vmatpush2.msra.mxu0 0.0
      %700 = vmatprep.subr.mxu0 0.0
      %701 = vmatpush2.msra.mxu0 0.0
      %702 = vmatprep.subr.mxu0 0.0
      %703 = vmatpush2.msra.mxu0 0.0
      %704 = vmatprep.mubr.f32.mxu0 0.0
      %705 = vmatmul.mubr.f32.gmra.mxu0 %v634
      %v706 = vpop.f32.mrf.mxu0
      %v707 = vadd.f32 0.0, %v706
      %v708 = vpop.f32.mrf.mxu0
      %v709 = vadd.f32 0.0, %v708
      %710 = vdwg.mxu0
      %v711 = vadd.f32 %v629, %v707
      %v712 = vadd.f32 %v630, %v709
      %713 = vrot.lane.b32.xlu0 %v238, 127
      %v714 = vpop.permute.xlu0 %713
      %715 = vrot.lane.b32.xlu0 %v240, 127
      %v716 = vpop.permute.xlu0 %715
      %vm717 = vcmp.lt.s32.totalorder %v226, 127
      %v718 = vsel %vm717, %v714, %v716
      %v719 = vsel %vm717, %v716, %v714
      %v720 = vsel %vm236, 1, 0
      %v721 = vsel %vm237, 1, 0
      %vm722 = vcmp.eq.s32.totalorder %v720, 1
      %vm723 = vcmp.eq.s32.totalorder %v721, 1
      %v724 = vsel %vm722, %v718, 0.0
      %v725 = vsel %vm723, %v719, 0.0
      %s726 = scalar_lea.vmem %s1, 40
      %v727 = vld [vmem:[%s726] sm:$0xff]
      %v729 = vsel %vm273, %v727, 0
      %v732 = vsel %vm277, %v724, 0
      %v735 = vsel %vm277, %v725, 0
      %737 = vmatprep.subr.mxu0 0.0
      %738 = vmatpush1.msra.mxu0 0.0
      %739 = vmatprep.subr.mxu0 0.0
      %740 = vmatpush1.msra.mxu0 0.0
      %741 = vmatprep.subr.mxu0 0.0
      %742 = vmatpush1.msra.mxu0 0.0
      %743 = vmatprep.subr.mxu0 0.0
      %744 = vmatpush1.msra.mxu0 0.0
      %745 = vmatprep.subr.mxu0 0.0
      %746 = vmatpush1.msra.mxu0 0.0
      %747 = vmatprep.subr.mxu0 0.0
      %748 = vmatpush1.msra.mxu0 0.0
      %749 = vmatprep.subr.mxu0 0.0
      %750 = vmatpush1.msra.mxu0 0.0
      %751 = vmatprep.subr.mxu0 0.0
      %752 = vmatpush1.msra.mxu0 0.0
      %753 = vmatprep.subr.mxu0 0.0
      %754 = vmatpush1.msra.mxu0 0.0
      %755 = vmatprep.subr.mxu0 0.0
      %756 = vmatpush1.msra.mxu0 0.0
      %757 = vmatprep.subr.mxu0 0.0
      %758 = vmatpush1.msra.mxu0 0.0
      %759 = vmatprep.subr.mxu0 0.0
      %760 = vmatpush1.msra.mxu0 0.0
      %761 = vmatprep.subr.mxu0 0.0
      %762 = vmatpush1.msra.mxu0 0.0
      %763 = vmatprep.subr.mxu0 0.0
      %764 = vmatpush1.msra.mxu0 0.0
      %765 = vmatprep.subr.mxu0 0.0
      %766 = vmatpush1.msra.mxu0 0.0
      %767 = vmatprep.subr.mxu0 %v735
      %768 = vmatpush1.msra.mxu0 %v732
      %769 = vmatprep.subr.mxu0 0.0
      %770 = vmatpush2.msra.mxu0 0.0
      %771 = vmatprep.subr.mxu0 0.0
      %772 = vmatpush2.msra.mxu0 0.0
      %773 = vmatprep.subr.mxu0 0.0
      %774 = vmatpush2.msra.mxu0 0.0
      %775 = vmatprep.subr.mxu0 0.0
      %776 = vmatpush2.msra.mxu0 0.0
      %777 = vmatprep.subr.mxu0 0.0
      %778 = vmatpush2.msra.mxu0 0.0
      %779 = vmatprep.subr.mxu0 0.0
      %780 = vmatpush2.msra.mxu0 0.0
      %781 = vmatprep.subr.mxu0 0.0
      %782 = vmatpush2.msra.mxu0 0.0
      %783 = vmatprep.subr.mxu0 0.0
      %784 = vmatpush2.msra.mxu0 0.0
      %785 = vmatprep.subr.mxu0 0.0
      %786 = vmatpush2.msra.mxu0 0.0
      %787 = vmatprep.subr.mxu0 0.0
      %788 = vmatpush2.msra.mxu0 0.0
      %789 = vmatprep.subr.mxu0 0.0
      %790 = vmatpush2.msra.mxu0 0.0
      %791 = vmatprep.subr.mxu0 0.0
      %792 = vmatpush2.msra.mxu0 0.0
      %793 = vmatprep.subr.mxu0 0.0
      %794 = vmatpush2.msra.mxu0 0.0
      %795 = vmatprep.subr.mxu0 0.0
      %796 = vmatpush2.msra.mxu0 0.0
      %797 = vmatprep.subr.mxu0 0.0
      %798 = vmatpush2.msra.mxu0 0.0
      %799 = vmatprep.subr.mxu0 0.0
      %800 = vmatpush2.msra.mxu0 0.0
      %801 = vmatprep.mubr.f32.mxu0 0.0
      %802 = vmatmul.mubr.f32.gmra.mxu0 %v729
      %v803 = vpop.f32.mrf.mxu0
      %v804 = vadd.f32 0.0, %v803
      %v805 = vpop.f32.mrf.mxu0
      %v806 = vadd.f32 0.0, %v805
      %807 = vdwg.mxu0
      %v808 = vadd.f32 %v711, %v804
      %v809 = vadd.f32 %v712, %v806
      %810 = vrot.lane.b32.xlu0 %v238, 113
      %v811 = vpop.permute.xlu0 %810
      %812 = vrot.lane.b32.xlu0 %v240, 113
      %v813 = vpop.permute.xlu0 %812
      %vm814 = vcmp.lt.s32.totalorder %v226, 113
      %v815 = vsel %vm814, %v811, %v813
      %v816 = vsel %vm814, %v813, %v811
      %vm817 = vmand %vm232, %vm234
      %vm818 = vmand %vm233, %vm235
      %v819 = vsel %vm817, 1, 0
      %v820 = vsel %vm818, 1, 0
      %vm821 = vcmp.eq.s32.totalorder %v819, 1
      %vm822 = vcmp.eq.s32.totalorder %v820, 1
      %v823 = vsel %vm821, %v815, 0.0
      %v824 = vsel %vm822, %v816, 0.0
      %s825 = scalar_lea.vmem %s1, 48
      %v826 = vld [vmem:[%s825] sm:$0xff]
      %v828 = vsel %vm273, %v826, 0
      %v831 = vsel %vm277, %v823, 0
      %v834 = vsel %vm277, %v824, 0
      %836 = vmatprep.subr.mxu0 0.0
      %837 = vmatpush1.msra.mxu0 0.0
      %838 = vmatprep.subr.mxu0 0.0
      %839 = vmatpush1.msra.mxu0 0.0
      %840 = vmatprep.subr.mxu0 0.0
      %841 = vmatpush1.msra.mxu0 0.0
      %842 = vmatprep.subr.mxu0 0.0
      %843 = vmatpush1.msra.mxu0 0.0
      %844 = vmatprep.subr.mxu0 0.0
      %845 = vmatpush1.msra.mxu0 0.0
      %846 = vmatprep.subr.mxu0 0.0
      %847 = vmatpush1.msra.mxu0 0.0
      %848 = vmatprep.subr.mxu0 0.0
      %849 = vmatpush1.msra.mxu0 0.0
      %850 = vmatprep.subr.mxu0 0.0
      %851 = vmatpush1.msra.mxu0 0.0
      %852 = vmatprep.subr.mxu0 0.0
      %853 = vmatpush1.msra.mxu0 0.0
      %854 = vmatprep.subr.mxu0 0.0
      %855 = vmatpush1.msra.mxu0 0.0
      %856 = vmatprep.subr.mxu0 0.0
      %857 = vmatpush1.msra.mxu0 0.0
      %858 = vmatprep.subr.mxu0 0.0
      %859 = vmatpush1.msra.mxu0 0.0
      %860 = vmatprep.subr.mxu0 0.0
      %861 = vmatpush1.msra.mxu0 0.0
      %862 = vmatprep.subr.mxu0 0.0
      %863 = vmatpush1.msra.mxu0 0.0
      %864 = vmatprep.subr.mxu0 0.0
      %865 = vmatpush1.msra.mxu0 0.0
      %866 = vmatprep.subr.mxu0 %v834
      %867 = vmatpush1.msra.mxu0 %v831
      %868 = vmatprep.subr.mxu0 0.0
      %869 = vmatpush2.msra.mxu0 0.0
      %870 = vmatprep.subr.mxu0 0.0
      %871 = vmatpush2.msra.mxu0 0.0
      %872 = vmatprep.subr.mxu0 0.0
      %873 = vmatpush2.msra.mxu0 0.0
      %874 = vmatprep.subr.mxu0 0.0
      %875 = vmatpush2.msra.mxu0 0.0
      %876 = vmatprep.subr.mxu0 0.0
      %877 = vmatpush2.msra.mxu0 0.0
      %878 = vmatprep.subr.mxu0 0.0
      %879 = vmatpush2.msra.mxu0 0.0
      %880 = vmatprep.subr.mxu0 0.0
      %881 = vmatpush2.msra.mxu0 0.0
      %882 = vmatprep.subr.mxu0 0.0
      %883 = vmatpush2.msra.mxu0 0.0
      %884 = vmatprep.subr.mxu0 0.0
      %885 = vmatpush2.msra.mxu0 0.0
      %886 = vmatprep.subr.mxu0 0.0
      %887 = vmatpush2.msra.mxu0 0.0
      %888 = vmatprep.subr.mxu0 0.0
      %889 = vmatpush2.msra.mxu0 0.0
      %890 = vmatprep.subr.mxu0 0.0
      %891 = vmatpush2.msra.mxu0 0.0
      %892 = vmatprep.subr.mxu0 0.0
      %893 = vmatpush2.msra.mxu0 0.0
      %894 = vmatprep.subr.mxu0 0.0
      %895 = vmatpush2.msra.mxu0 0.0
      %896 = vmatprep.subr.mxu0 0.0
      %897 = vmatpush2.msra.mxu0 0.0
      %898 = vmatprep.subr.mxu0 0.0
      %899 = vmatpush2.msra.mxu0 0.0
      %900 = vmatprep.mubr.f32.mxu0 0.0
      %901 = vmatmul.mubr.f32.gmra.mxu0 %v828
      %v902 = vpop.f32.mrf.mxu0
      %v903 = vadd.f32 0.0, %v902
      %v904 = vpop.f32.mrf.mxu0
      %v905 = vadd.f32 0.0, %v904
      %906 = vdwg.mxu0
      %v907 = vadd.f32 %v808, %v903
      %v908 = vadd.f32 %v809, %v905
      %909 = vrot.lane.b32.xlu0 %v238, 112
      %v910 = vpop.permute.xlu0 %909
      %911 = vrot.lane.b32.xlu0 %v240, 112
      %v912 = vpop.permute.xlu0 %911
      %vm913 = vcmp.lt.s32.totalorder %v226, 112
      %v914 = vsel %vm913, %v910, %v912
      %v915 = vsel %vm913, %v912, %v910
      %v916 = vsel %vm232, 1, 0
      %v917 = vsel %vm233, 1, 0
      %vm918 = vcmp.eq.s32.totalorder %v916, 1
      %vm919 = vcmp.eq.s32.totalorder %v917, 1
      %v920 = vsel %vm918, %v914, 0.0
      %v921 = vsel %vm919, %v915, 0.0
      %s922 = scalar_lea.vmem %s1, 56
      %v923 = vld [vmem:[%s922] sm:$0xff]
      %v925 = vsel %vm273, %v923, 0
      %v928 = vsel %vm277, %v920, 0
      %v931 = vsel %vm277, %v921, 0
      %933 = vmatprep.subr.mxu0 0.0
      %934 = vmatpush1.msra.mxu0 0.0
      %935 = vmatprep.subr.mxu0 0.0
      %936 = vmatpush1.msra.mxu0 0.0
      %937 = vmatprep.subr.mxu0 0.0
      %938 = vmatpush1.msra.mxu0 0.0
      %939 = vmatprep.subr.mxu0 0.0
      %940 = vmatpush1.msra.mxu0 0.0
      %941 = vmatprep.subr.mxu0 0.0
      %942 = vmatpush1.msra.mxu0 0.0
      %943 = vmatprep.subr.mxu0 0.0
      %944 = vmatpush1.msra.mxu0 0.0
      %945 = vmatprep.subr.mxu0 0.0
      %946 = vmatpush1.msra.mxu0 0.0
      %947 = vmatprep.subr.mxu0 0.0
      %948 = vmatpush1.msra.mxu0 0.0
      %949 = vmatprep.subr.mxu0 0.0
      %950 = vmatpush1.msra.mxu0 0.0
      %951 = vmatprep.subr.mxu0 0.0
      %952 = vmatpush1.msra.mxu0 0.0
      %953 = vmatprep.subr.mxu0 0.0
      %954 = vmatpush1.msra.mxu0 0.0
      %955 = vmatprep.subr.mxu0 0.0
      %956 = vmatpush1.msra.mxu0 0.0
      %957 = vmatprep.subr.mxu0 0.0
      %958 = vmatpush1.msra.mxu0 0.0
      %959 = vmatprep.subr.mxu0 0.0
      %960 = vmatpush1.msra.mxu0 0.0
      %961 = vmatprep.subr.mxu0 0.0
      %962 = vmatpush1.msra.mxu0 0.0
      %963 = vmatprep.subr.mxu0 %v931
      %964 = vmatpush1.msra.mxu0 %v928
      %965 = vmatprep.subr.mxu0 0.0
      %966 = vmatpush2.msra.mxu0 0.0
      %967 = vmatprep.subr.mxu0 0.0
      %968 = vmatpush2.msra.mxu0 0.0
      %969 = vmatprep.subr.mxu0 0.0
      %970 = vmatpush2.msra.mxu0 0.0
      %971 = vmatprep.subr.mxu0 0.0
      %972 = vmatpush2.msra.mxu0 0.0
      %973 = vmatprep.subr.mxu0 0.0
      %974 = vmatpush2.msra.mxu0 0.0
      %975 = vmatprep.subr.mxu0 0.0
      %976 = vmatpush2.msra.mxu0 0.0
      %977 = vmatprep.subr.mxu0 0.0
      %978 = vmatpush2.msra.mxu0 0.0
      %979 = vmatprep.subr.mxu0 0.0
      %980 = vmatpush2.msra.mxu0 0.0
      %981 = vmatprep.subr.mxu0 0.0
      %982 = vmatpush2.msra.mxu0 0.0
      %983 = vmatprep.subr.mxu0 0.0
      %984 = vmatpush2.msra.mxu0 0.0
      %985 = vmatprep.subr.mxu0 0.0
      %986 = vmatpush2.msra.mxu0 0.0
      %987 = vmatprep.subr.mxu0 0.0
      %988 = vmatpush2.msra.mxu0 0.0
      %989 = vmatprep.subr.mxu0 0.0
      %990 = vmatpush2.msra.mxu0 0.0
      %991 = vmatprep.subr.mxu0 0.0
      %992 = vmatpush2.msra.mxu0 0.0
      %993 = vmatprep.subr.mxu0 0.0
      %994 = vmatpush2.msra.mxu0 0.0
      %995 = vmatprep.subr.mxu0 0.0
      %996 = vmatpush2.msra.mxu0 0.0
      %997 = vmatprep.mubr.f32.mxu0 0.0
      %998 = vmatmul.mubr.f32.gmra.mxu0 %v925
      %v999 = vpop.f32.mrf.mxu0
      %v1000 = vadd.f32 0.0, %v999
      %v1001 = vpop.f32.mrf.mxu0
      %v1002 = vadd.f32 0.0, %v1001
      %1003 = vdwg.mxu0
      %v1004 = vadd.f32 %v907, %v1000
      %v1005 = vadd.f32 %v908, %v1002
      %1006 = vrot.lane.b32.xlu0 %v238, 111
      %v1007 = vpop.permute.xlu0 %1006
      %1008 = vrot.lane.b32.xlu0 %v240, 111
      %v1009 = vpop.permute.xlu0 %1008
      %vm1010 = vcmp.lt.s32.totalorder %v226, 111
      %v1011 = vsel %vm1010, %v1007, %v1009
      %v1012 = vsel %vm1010, %v1009, %v1007
      %vm1013 = vmand %vm232, %vm236
      %vm1014 = vmand %vm233, %vm237
      %v1015 = vsel %vm1013, 1, 0
      %v1016 = vsel %vm1014, 1, 0
      %vm1017 = vcmp.eq.s32.totalorder %v1015, 1
      %vm1018 = vcmp.eq.s32.totalorder %v1016, 1
      %v1019 = vsel %vm1017, %v1011, 0.0
      %v1020 = vsel %vm1018, %v1012, 0.0
      %s1021 = scalar_lea.vmem %s1, 64
      %v1022 = vld [vmem:[%s1021] sm:$0xff]
      %v1024 = vsel %vm273, %v1022, 0
      %v1027 = vsel %vm277, %v1019, 0
      %v1030 = vsel %vm277, %v1020, 0
      %1032 = vmatprep.subr.mxu0 0.0
      %1033 = vmatpush1.msra.mxu0 0.0
      %1034 = vmatprep.subr.mxu0 0.0
      %1035 = vmatpush1.msra.mxu0 0.0
      %1036 = vmatprep.subr.mxu0 0.0
      %1037 = vmatpush1.msra.mxu0 0.0
      %1038 = vmatprep.subr.mxu0 0.0
      %1039 = vmatpush1.msra.mxu0 0.0
      %1040 = vmatprep.subr.mxu0 0.0
      %1041 = vmatpush1.msra.mxu0 0.0
      %1042 = vmatprep.subr.mxu0 0.0
      %1043 = vmatpush1.msra.mxu0 0.0
      %1044 = vmatprep.subr.mxu0 0.0
      %1045 = vmatpush1.msra.mxu0 0.0
      %1046 = vmatprep.subr.mxu0 0.0
      %1047 = vmatpush1.msra.mxu0 0.0
      %1048 = vmatprep.subr.mxu0 0.0
      %1049 = vmatpush1.msra.mxu0 0.0
      %1050 = vmatprep.subr.mxu0 0.0
      %1051 = vmatpush1.msra.mxu0 0.0
      %1052 = vmatprep.subr.mxu0 0.0
      %1053 = vmatpush1.msra.mxu0 0.0
      %1054 = vmatprep.subr.mxu0 0.0
      %1055 = vmatpush1.msra.mxu0 0.0
      %1056 = vmatprep.subr.mxu0 0.0
      %1057 = vmatpush1.msra.mxu0 0.0
      %1058 = vmatprep.subr.mxu0 0.0
      %1059 = vmatpush1.msra.mxu0 0.0
      %1060 = vmatprep.subr.mxu0 0.0
      %1061 = vmatpush1.msra.mxu0 0.0
      %1062 = vmatprep.subr.mxu0 %v1030
      %1063 = vmatpush1.msra.mxu0 %v1027
      %1064 = vmatprep.subr.mxu0 0.0
      %1065 = vmatpush2.msra.mxu0 0.0
      %1066 = vmatprep.subr.mxu0 0.0
      %1067 = vmatpush2.msra.mxu0 0.0
      %1068 = vmatprep.subr.mxu0 0.0
      %1069 = vmatpush2.msra.mxu0 0.0
      %1070 = vmatprep.subr.mxu0 0.0
      %1071 = vmatpush2.msra.mxu0 0.0
      %1072 = vmatprep.subr.mxu0 0.0
      %1073 = vmatpush2.msra.mxu0 0.0
      %1074 = vmatprep.subr.mxu0 0.0
      %1075 = vmatpush2.msra.mxu0 0.0
      %1076 = vmatprep.subr.mxu0 0.0
      %1077 = vmatpush2.msra.mxu0 0.0
      %1078 = vmatprep.subr.mxu0 0.0
      %1079 = vmatpush2.msra.mxu0 0.0
      %1080 = vmatprep.subr.mxu0 0.0
      %1081 = vmatpush2.msra.mxu0 0.0
      %1082 = vmatprep.subr.mxu0 0.0
      %1083 = vmatpush2.msra.mxu0 0.0
      %1084 = vmatprep.subr.mxu0 0.0
      %1085 = vmatpush2.msra.mxu0 0.0
      %1086 = vmatprep.subr.mxu0 0.0
      %1087 = vmatpush2.msra.mxu0 0.0
      %1088 = vmatprep.subr.mxu0 0.0
      %1089 = vmatpush2.msra.mxu0 0.0
      %1090 = vmatprep.subr.mxu0 0.0
      %1091 = vmatpush2.msra.mxu0 0.0
      %1092 = vmatprep.subr.mxu0 0.0
      %1093 = vmatpush2.msra.mxu0 0.0
      %1094 = vmatprep.subr.mxu0 0.0
      %1095 = vmatpush2.msra.mxu0 0.0
      %1096 = vmatprep.mubr.f32.mxu0 0.0
      %1097 = vmatmul.mubr.f32.gmra.mxu0 %v1024
      %v1098 = vpop.f32.mrf.mxu0
      %v1099 = vadd.f32 0.0, %v1098
      %v1100 = vpop.f32.mrf.mxu0
      %v1101 = vadd.f32 0.0, %v1100
      %1102 = vdwg.mxu0
      %v1103 = vadd.f32 %v1004, %v1099
      %v1104 = vadd.f32 %v1005, %v1101
      %v1105 = vld [vmem:[%s2] sm:$0xff]
      %1107 = vset.pattern.permute.xlu0 0
      %1108 = vperm.xlu0 %1107, %v1105
      %v1109 = vpop.permute.xlu0 %1108
      %v1111 = vadd.f32 %v1103, %v1109
      %v1112 = vadd.f32 %v1104, %v1109
      %v1113 = vmax.f32 %v1111, 0.0
      %v1114 = vmax.f32 %v1112, 0.0
      %1115 = vrot.lane.b32.xlu0 %v1113, 17
      %v1116 = vpop.permute.xlu0 %1115
      %1117 = vrot.lane.b32.xlu0 %v1114, 17
      %v1118 = vpop.permute.xlu0 %1117
      %v1119 = vsel %vm246, %v1116, %v1118
      %v1120 = vsel %vm246, %v1118, %v1116
      %v1121 = vsel %vm253, %v1120, 0.0
      %v1122 = vsel %vm254, %v1119, 0.0
      %v1123 = vld [vmem:[%s3] sm:$0xff]
      %1124 = vrot.lane.b32.xlu0 %v1113, 16
      %v1125 = vpop.permute.xlu0 %1124
      %1126 = vrot.lane.b32.xlu0 %v1114, 16
      %v1127 = vpop.permute.xlu0 %1126
      %v1128 = vsel %vm262, %v1125, %v1127
      %v1129 = vsel %vm262, %v1127, %v1125
      %v1130 = vsel %vm267, %v1129, 0.0
      %v1131 = vsel %vm268, %v1128, 0.0
      %s1132 = scalar_lea.vmem %s3, 8
      %v1133 = vld [vmem:[%s1132] sm:$0xff]
      %vm1134 = vcmask 64512
      %v1136 = vsel %vm1134, %v1133, 0
      %1138 = vmatprep.subr.mxu0 0.0
      %1139 = vmatpush1.msra.mxu0 0.0
      %1140 = vmatprep.subr.mxu0 0.0
      %1141 = vmatpush1.msra.mxu0 0.0
      %1142 = vmatprep.subr.mxu0 0.0
      %1143 = vmatpush1.msra.mxu0 0.0
      %1144 = vmatprep.subr.mxu0 0.0
      %1145 = vmatpush1.msra.mxu0 0.0
      %1146 = vmatprep.subr.mxu0 0.0
      %1147 = vmatpush1.msra.mxu0 0.0
      %1148 = vmatprep.subr.mxu0 0.0
      %1149 = vmatpush1.msra.mxu0 0.0
      %1150 = vmatprep.subr.mxu0 0.0
      %1151 = vmatpush1.msra.mxu0 0.0
      %1152 = vmatprep.subr.mxu0 0.0
      %1153 = vmatpush1.msra.mxu0 0.0
      %1154 = vmatprep.subr.mxu0 0.0
      %1155 = vmatpush1.msra.mxu0 0.0
      %1156 = vmatprep.subr.mxu0 0.0
      %1157 = vmatpush1.msra.mxu0 0.0
      %1158 = vmatprep.subr.mxu0 0.0
      %1159 = vmatpush1.msra.mxu0 0.0
      %1160 = vmatprep.subr.mxu0 0.0
      %1161 = vmatpush1.msra.mxu0 0.0
      %1162 = vmatprep.subr.mxu0 0.0
      %1163 = vmatpush1.msra.mxu0 0.0
      %1164 = vmatprep.subr.mxu0 0.0
      %1165 = vmatpush1.msra.mxu0 0.0
      %1166 = vmatprep.subr.mxu0 0.0
      %1167 = vmatpush1.msra.mxu0 0.0
      %1168 = vmatprep.subr.mxu0 %v1131
      %1169 = vmatpush1.msra.mxu0 %v1130
      %1170 = vmatprep.subr.mxu0 0.0
      %1171 = vmatpush2.msra.mxu0 0.0
      %1172 = vmatprep.subr.mxu0 0.0
      %1173 = vmatpush2.msra.mxu0 0.0
      %1174 = vmatprep.subr.mxu0 0.0
      %1175 = vmatpush2.msra.mxu0 0.0
      %1176 = vmatprep.subr.mxu0 0.0
      %1177 = vmatpush2.msra.mxu0 0.0
      %1178 = vmatprep.subr.mxu0 0.0
      %1179 = vmatpush2.msra.mxu0 0.0
      %1180 = vmatprep.subr.mxu0 0.0
      %1181 = vmatpush2.msra.mxu0 0.0
      %1182 = vmatprep.subr.mxu0 0.0
      %1183 = vmatpush2.msra.mxu0 0.0
      %1184 = vmatprep.subr.mxu0 0.0
      %1185 = vmatpush2.msra.mxu0 0.0
      %1186 = vmatprep.subr.mxu0 0.0
      %1187 = vmatpush2.msra.mxu0 0.0
      %1188 = vmatprep.subr.mxu0 0.0
      %1189 = vmatpush2.msra.mxu0 0.0
      %1190 = vmatprep.subr.mxu0 0.0
      %1191 = vmatpush2.msra.mxu0 0.0
      %1192 = vmatprep.subr.mxu0 0.0
      %1193 = vmatpush2.msra.mxu0 0.0
      %1194 = vmatprep.subr.mxu0 0.0
      %1195 = vmatpush2.msra.mxu0 0.0
      %1196 = vmatprep.subr.mxu0 0.0
      %1197 = vmatpush2.msra.mxu0 0.0
      %1198 = vmatprep.subr.mxu0 0.0
      %1199 = vmatpush2.msra.mxu0 0.0
      %1200 = vmatprep.subr.mxu0 0.0
      %1201 = vmatpush2.msra.mxu0 0.0
      %1202 = vmatprep.mubr.f32.mxu0 0.0
      %1203 = vmatmul.mubr.f32.gmra.mxu0 %v1136
      %v1204 = vpop.f32.mrf.mxu0
      %v1205 = vadd.f32 0.0, %v1204
      %v1206 = vpop.f32.mrf.mxu0
      %v1207 = vadd.f32 0.0, %v1206
      %1208 = vdwg.mxu0
      %v1210 = vsel %vm1134, %v1123, 0
      %1212 = vmatprep.subr.mxu0 0.0
      %1213 = vmatpush1.msra.mxu0 0.0
      %1214 = vmatprep.subr.mxu0 0.0
      %1215 = vmatpush1.msra.mxu0 0.0
      %1216 = vmatprep.subr.mxu0 0.0
      %1217 = vmatpush1.msra.mxu0 0.0
      %1218 = vmatprep.subr.mxu0 0.0
      %1219 = vmatpush1.msra.mxu0 0.0
      %1220 = vmatprep.subr.mxu0 0.0
      %1221 = vmatpush1.msra.mxu0 0.0
      %1222 = vmatprep.subr.mxu0 0.0
      %1223 = vmatpush1.msra.mxu0 0.0
      %1224 = vmatprep.subr.mxu0 0.0
      %1225 = vmatpush1.msra.mxu0 0.0
      %1226 = vmatprep.subr.mxu0 0.0
      %1227 = vmatpush1.msra.mxu0 0.0
      %1228 = vmatprep.subr.mxu0 0.0
      %1229 = vmatpush1.msra.mxu0 0.0
      %1230 = vmatprep.subr.mxu0 0.0
      %1231 = vmatpush1.msra.mxu0 0.0
      %1232 = vmatprep.subr.mxu0 0.0
      %1233 = vmatpush1.msra.mxu0 0.0
      %1234 = vmatprep.subr.mxu0 0.0
      %1235 = vmatpush1.msra.mxu0 0.0
      %1236 = vmatprep.subr.mxu0 0.0
      %1237 = vmatpush1.msra.mxu0 0.0
      %1238 = vmatprep.subr.mxu0 0.0
      %1239 = vmatpush1.msra.mxu0 0.0
      %1240 = vmatprep.subr.mxu0 0.0
      %1241 = vmatpush1.msra.mxu0 0.0
      %1242 = vmatprep.subr.mxu0 %v1122
      %1243 = vmatpush1.msra.mxu0 %v1121
      %1244 = vmatprep.subr.mxu0 0.0
      %1245 = vmatpush2.msra.mxu0 0.0
      %1246 = vmatprep.subr.mxu0 0.0
      %1247 = vmatpush2.msra.mxu0 0.0
      %1248 = vmatprep.subr.mxu0 0.0
      %1249 = vmatpush2.msra.mxu0 0.0
      %1250 = vmatprep.subr.mxu0 0.0
      %1251 = vmatpush2.msra.mxu0 0.0
      %1252 = vmatprep.subr.mxu0 0.0
      %1253 = vmatpush2.msra.mxu0 0.0
      %1254 = vmatprep.subr.mxu0 0.0
      %1255 = vmatpush2.msra.mxu0 0.0
      %1256 = vmatprep.subr.mxu0 0.0
      %1257 = vmatpush2.msra.mxu0 0.0
      %1258 = vmatprep.subr.mxu0 0.0
      %1259 = vmatpush2.msra.mxu0 0.0
      %1260 = vmatprep.subr.mxu0 0.0
      %1261 = vmatpush2.msra.mxu0 0.0
      %1262 = vmatprep.subr.mxu0 0.0
      %1263 = vmatpush2.msra.mxu0 0.0
      %1264 = vmatprep.subr.mxu0 0.0
      %1265 = vmatpush2.msra.mxu0 0.0
      %1266 = vmatprep.subr.mxu0 0.0
      %1267 = vmatpush2.msra.mxu0 0.0
      %1268 = vmatprep.subr.mxu0 0.0
      %1269 = vmatpush2.msra.mxu0 0.0
      %1270 = vmatprep.subr.mxu0 0.0
      %1271 = vmatpush2.msra.mxu0 0.0
      %1272 = vmatprep.subr.mxu0 0.0
      %1273 = vmatpush2.msra.mxu0 0.0
      %1274 = vmatprep.subr.mxu0 0.0
      %1275 = vmatpush2.msra.mxu0 0.0
      %1276 = vmatprep.mubr.f32.mxu0 0.0
      %1277 = vmatmul.mubr.f32.gmra.mxu0 %v1210
      %v1278 = vpop.f32.mrf.mxu0
      %v1279 = vadd.f32 %v1205, %v1278
      %v1280 = vpop.f32.mrf.mxu0
      %v1281 = vadd.f32 %v1207, %v1280
      %1282 = vdwg.mxu0
      %1283 = vrot.lane.b32.xlu0 %v1113, 15
      %v1284 = vpop.permute.xlu0 %1283
      %1285 = vrot.lane.b32.xlu0 %v1114, 15
      %v1286 = vpop.permute.xlu0 %1285
      %v1287 = vsel %vm439, %v1284, %v1286
      %v1288 = vsel %vm439, %v1286, %v1284
      %v1289 = vsel %vm446, %v1288, 0.0
      %v1290 = vsel %vm447, %v1287, 0.0
      %s1291 = scalar_lea.vmem %s3, 16
      %v1292 = vld [vmem:[%s1291] sm:$0xff]
      %v1294 = vsel %vm1134, %v1292, 0
      %1296 = vmatprep.subr.mxu0 0.0
      %1297 = vmatpush1.msra.mxu0 0.0
      %1298 = vmatprep.subr.mxu0 0.0
      %1299 = vmatpush1.msra.mxu0 0.0
      %1300 = vmatprep.subr.mxu0 0.0
      %1301 = vmatpush1.msra.mxu0 0.0
      %1302 = vmatprep.subr.mxu0 0.0
      %1303 = vmatpush1.msra.mxu0 0.0
      %1304 = vmatprep.subr.mxu0 0.0
      %1305 = vmatpush1.msra.mxu0 0.0
      %1306 = vmatprep.subr.mxu0 0.0
      %1307 = vmatpush1.msra.mxu0 0.0
      %1308 = vmatprep.subr.mxu0 0.0
      %1309 = vmatpush1.msra.mxu0 0.0
      %1310 = vmatprep.subr.mxu0 0.0
      %1311 = vmatpush1.msra.mxu0 0.0
      %1312 = vmatprep.subr.mxu0 0.0
      %1313 = vmatpush1.msra.mxu0 0.0
      %1314 = vmatprep.subr.mxu0 0.0
      %1315 = vmatpush1.msra.mxu0 0.0
      %1316 = vmatprep.subr.mxu0 0.0
      %1317 = vmatpush1.msra.mxu0 0.0
      %1318 = vmatprep.subr.mxu0 0.0
      %1319 = vmatpush1.msra.mxu0 0.0
      %1320 = vmatprep.subr.mxu0 0.0
      %1321 = vmatpush1.msra.mxu0 0.0
      %1322 = vmatprep.subr.mxu0 0.0
      %1323 = vmatpush1.msra.mxu0 0.0
      %1324 = vmatprep.subr.mxu0 0.0
      %1325 = vmatpush1.msra.mxu0 0.0
      %1326 = vmatprep.subr.mxu0 %v1290
      %1327 = vmatpush1.msra.mxu0 %v1289
      %1328 = vmatprep.subr.mxu0 0.0
      %1329 = vmatpush2.msra.mxu0 0.0
      %1330 = vmatprep.subr.mxu0 0.0
      %1331 = vmatpush2.msra.mxu0 0.0
      %1332 = vmatprep.subr.mxu0 0.0
      %1333 = vmatpush2.msra.mxu0 0.0
      %1334 = vmatprep.subr.mxu0 0.0
      %1335 = vmatpush2.msra.mxu0 0.0
      %1336 = vmatprep.subr.mxu0 0.0
      %1337 = vmatpush2.msra.mxu0 0.0
      %1338 = vmatprep.subr.mxu0 0.0
      %1339 = vmatpush2.msra.mxu0 0.0
      %1340 = vmatprep.subr.mxu0 0.0
      %1341 = vmatpush2.msra.mxu0 0.0
      %1342 = vmatprep.subr.mxu0 0.0
      %1343 = vmatpush2.msra.mxu0 0.0
      %1344 = vmatprep.subr.mxu0 0.0
      %1345 = vmatpush2.msra.mxu0 0.0
      %1346 = vmatprep.subr.mxu0 0.0
      %1347 = vmatpush2.msra.mxu0 0.0
      %1348 = vmatprep.subr.mxu0 0.0
      %1349 = vmatpush2.msra.mxu0 0.0
      %1350 = vmatprep.subr.mxu0 0.0
      %1351 = vmatpush2.msra.mxu0 0.0
      %1352 = vmatprep.subr.mxu0 0.0
      %1353 = vmatpush2.msra.mxu0 0.0
      %1354 = vmatprep.subr.mxu0 0.0
      %1355 = vmatpush2.msra.mxu0 0.0
      %1356 = vmatprep.subr.mxu0 0.0
      %1357 = vmatpush2.msra.mxu0 0.0
      %1358 = vmatprep.subr.mxu0 0.0
      %1359 = vmatpush2.msra.mxu0 0.0
      %1360 = vmatprep.mubr.f32.mxu0 0.0
      %1361 = vmatmul.mubr.f32.gmra.mxu0 %v1294
      %v1362 = vpop.f32.mrf.mxu0
      %v1363 = vadd.f32 0.0, %v1362
      %v1364 = vpop.f32.mrf.mxu0
      %v1365 = vadd.f32 0.0, %v1364
      %1366 = vdwg.mxu0
      %v1367 = vadd.f32 %v1279, %v1363
      %v1368 = vadd.f32 %v1281, %v1365
      %1369 = vrot.lane.b32.xlu0 %v1113, 1
      %v1370 = vpop.permute.xlu0 %1369
      %1371 = vrot.lane.b32.xlu0 %v1114, 1
      %v1372 = vpop.permute.xlu0 %1371
      %v1373 = vsel %vm538, %v1370, %v1372
      %v1374 = vsel %vm538, %v1372, %v1370
      %v1375 = vsel %vm543, %v1374, 0.0
      %v1376 = vsel %vm544, %v1373, 0.0
      %s1377 = scalar_lea.vmem %s3, 24
      %v1378 = vld [vmem:[%s1377] sm:$0xff]
      %v1380 = vsel %vm1134, %v1378, 0
      %1382 = vmatprep.subr.mxu0 0.0
      %1383 = vmatpush1.msra.mxu0 0.0
      %1384 = vmatprep.subr.mxu0 0.0
      %1385 = vmatpush1.msra.mxu0 0.0
      %1386 = vmatprep.subr.mxu0 0.0
      %1387 = vmatpush1.msra.mxu0 0.0
      %1388 = vmatprep.subr.mxu0 0.0
      %1389 = vmatpush1.msra.mxu0 0.0
      %1390 = vmatprep.subr.mxu0 0.0
      %1391 = vmatpush1.msra.mxu0 0.0
      %1392 = vmatprep.subr.mxu0 0.0
      %1393 = vmatpush1.msra.mxu0 0.0
      %1394 = vmatprep.subr.mxu0 0.0
      %1395 = vmatpush1.msra.mxu0 0.0
      %1396 = vmatprep.subr.mxu0 0.0
      %1397 = vmatpush1.msra.mxu0 0.0
      %1398 = vmatprep.subr.mxu0 0.0
      %1399 = vmatpush1.msra.mxu0 0.0
      %1400 = vmatprep.subr.mxu0 0.0
      %1401 = vmatpush1.msra.mxu0 0.0
      %1402 = vmatprep.subr.mxu0 0.0
      %1403 = vmatpush1.msra.mxu0 0.0
      %1404 = vmatprep.subr.mxu0 0.0
      %1405 = vmatpush1.msra.mxu0 0.0
      %1406 = vmatprep.subr.mxu0 0.0
      %1407 = vmatpush1.msra.mxu0 0.0
      %1408 = vmatprep.subr.mxu0 0.0
      %1409 = vmatpush1.msra.mxu0 0.0
      %1410 = vmatprep.subr.mxu0 0.0
      %1411 = vmatpush1.msra.mxu0 0.0
      %1412 = vmatprep.subr.mxu0 %v1376
      %1413 = vmatpush1.msra.mxu0 %v1375
      %1414 = vmatprep.subr.mxu0 0.0
      %1415 = vmatpush2.msra.mxu0 0.0
      %1416 = vmatprep.subr.mxu0 0.0
      %1417 = vmatpush2.msra.mxu0 0.0
      %1418 = vmatprep.subr.mxu0 0.0
      %1419 = vmatpush2.msra.mxu0 0.0
      %1420 = vmatprep.subr.mxu0 0.0
      %1421 = vmatpush2.msra.mxu0 0.0
      %1422 = vmatprep.subr.mxu0 0.0
      %1423 = vmatpush2.msra.mxu0 0.0
      %1424 = vmatprep.subr.mxu0 0.0
      %1425 = vmatpush2.msra.mxu0 0.0
      %1426 = vmatprep.subr.mxu0 0.0
      %1427 = vmatpush2.msra.mxu0 0.0
      %1428 = vmatprep.subr.mxu0 0.0
      %1429 = vmatpush2.msra.mxu0 0.0
      %1430 = vmatprep.subr.mxu0 0.0
      %1431 = vmatpush2.msra.mxu0 0.0
      %1432 = vmatprep.subr.mxu0 0.0
      %1433 = vmatpush2.msra.mxu0 0.0
      %1434 = vmatprep.subr.mxu0 0.0
      %1435 = vmatpush2.msra.mxu0 0.0
      %1436 = vmatprep.subr.mxu0 0.0
      %1437 = vmatpush2.msra.mxu0 0.0
      %1438 = vmatprep.subr.mxu0 0.0
      %1439 = vmatpush2.msra.mxu0 0.0
      %1440 = vmatprep.subr.mxu0 0.0
      %1441 = vmatpush2.msra.mxu0 0.0
      %1442 = vmatprep.subr.mxu0 0.0
      %1443 = vmatpush2.msra.mxu0 0.0
      %1444 = vmatprep.subr.mxu0 0.0
      %1445 = vmatpush2.msra.mxu0 0.0
      %1446 = vmatprep.mubr.f32.mxu0 0.0
      %1447 = vmatmul.mubr.f32.gmra.mxu0 %v1380
      %v1448 = vpop.f32.mrf.mxu0
      %v1449 = vadd.f32 0.0, %v1448
      %v1450 = vpop.f32.mrf.mxu0
      %v1451 = vadd.f32 0.0, %v1450
      %1452 = vdwg.mxu0
      %v1453 = vadd.f32 %v1367, %v1449
      %v1454 = vadd.f32 %v1368, %v1451
      %s1455 = scalar_lea.vmem %s3, 32
      %v1456 = vld [vmem:[%s1455] sm:$0xff]
      %v1458 = vsel %vm1134, %v1456, 0
      %1460 = vmatprep.subr.mxu0 0.0
      %1461 = vmatpush1.msra.mxu0 0.0
      %1462 = vmatprep.subr.mxu0 0.0
      %1463 = vmatpush1.msra.mxu0 0.0
      %1464 = vmatprep.subr.mxu0 0.0
      %1465 = vmatpush1.msra.mxu0 0.0
      %1466 = vmatprep.subr.mxu0 0.0
      %1467 = vmatpush1.msra.mxu0 0.0
      %1468 = vmatprep.subr.mxu0 0.0
      %1469 = vmatpush1.msra.mxu0 0.0
      %1470 = vmatprep.subr.mxu0 0.0
      %1471 = vmatpush1.msra.mxu0 0.0
      %1472 = vmatprep.subr.mxu0 0.0
      %1473 = vmatpush1.msra.mxu0 0.0
      %1474 = vmatprep.subr.mxu0 0.0
      %1475 = vmatpush1.msra.mxu0 0.0
      %1476 = vmatprep.subr.mxu0 0.0
      %1477 = vmatpush1.msra.mxu0 0.0
      %1478 = vmatprep.subr.mxu0 0.0
      %1479 = vmatpush1.msra.mxu0 0.0
      %1480 = vmatprep.subr.mxu0 0.0
      %1481 = vmatpush1.msra.mxu0 0.0
      %1482 = vmatprep.subr.mxu0 0.0
      %1483 = vmatpush1.msra.mxu0 0.0
      %1484 = vmatprep.subr.mxu0 0.0
      %1485 = vmatpush1.msra.mxu0 0.0
      %1486 = vmatprep.subr.mxu0 0.0
      %1487 = vmatpush1.msra.mxu0 0.0
      %1488 = vmatprep.subr.mxu0 0.0
      %1489 = vmatpush1.msra.mxu0 0.0
      %1490 = vmatprep.subr.mxu0 %v1114
      %1491 = vmatpush1.msra.mxu0 %v1113
      %1492 = vmatprep.subr.mxu0 0.0
      %1493 = vmatpush2.msra.mxu0 0.0
      %1494 = vmatprep.subr.mxu0 0.0
      %1495 = vmatpush2.msra.mxu0 0.0
      %1496 = vmatprep.subr.mxu0 0.0
      %1497 = vmatpush2.msra.mxu0 0.0
      %1498 = vmatprep.subr.mxu0 0.0
      %1499 = vmatpush2.msra.mxu0 0.0
      %1500 = vmatprep.subr.mxu0 0.0
      %1501 = vmatpush2.msra.mxu0 0.0
      %1502 = vmatprep.subr.mxu0 0.0
      %1503 = vmatpush2.msra.mxu0 0.0
      %1504 = vmatprep.subr.mxu0 0.0
      %1505 = vmatpush2.msra.mxu0 0.0
      %1506 = vmatprep.subr.mxu0 0.0
      %1507 = vmatpush2.msra.mxu0 0.0
      %1508 = vmatprep.subr.mxu0 0.0
      %1509 = vmatpush2.msra.mxu0 0.0
      %1510 = vmatprep.subr.mxu0 0.0
      %1511 = vmatpush2.msra.mxu0 0.0
      %1512 = vmatprep.subr.mxu0 0.0
      %1513 = vmatpush2.msra.mxu0 0.0
      %1514 = vmatprep.subr.mxu0 0.0
      %1515 = vmatpush2.msra.mxu0 0.0
      %1516 = vmatprep.subr.mxu0 0.0
      %1517 = vmatpush2.msra.mxu0 0.0
      %1518 = vmatprep.subr.mxu0 0.0
      %1519 = vmatpush2.msra.mxu0 0.0
      %1520 = vmatprep.subr.mxu0 0.0
      %1521 = vmatpush2.msra.mxu0 0.0
      %1522 = vmatprep.subr.mxu0 0.0
      %1523 = vmatpush2.msra.mxu0 0.0
      %1524 = vmatprep.mubr.f32.mxu0 0.0
      %1525 = vmatmul.mubr.f32.gmra.mxu0 %v1458
      %v1526 = vpop.f32.mrf.mxu0
      %v1527 = vadd.f32 0.0, %v1526
      %v1528 = vpop.f32.mrf.mxu0
      %v1529 = vadd.f32 0.0, %v1528
      %1530 = vdwg.mxu0
      %v1531 = vadd.f32 %v1453, %v1527
      %v1532 = vadd.f32 %v1454, %v1529
      %1533 = vrot.lane.b32.xlu0 %v1113, 127
      %v1534 = vpop.permute.xlu0 %1533
      %1535 = vrot.lane.b32.xlu0 %v1114, 127
      %v1536 = vpop.permute.xlu0 %1535
      %v1537 = vsel %vm717, %v1534, %v1536
      %v1538 = vsel %vm717, %v1536, %v1534
      %v1539 = vsel %vm722, %v1537, 0.0
      %v1540 = vsel %vm723, %v1538, 0.0
      %s1541 = scalar_lea.vmem %s3, 40
      %v1542 = vld [vmem:[%s1541] sm:$0xff]
      %v1544 = vsel %vm1134, %v1542, 0
      %1546 = vmatprep.subr.mxu0 0.0
      %1547 = vmatpush1.msra.mxu0 0.0
      %1548 = vmatprep.subr.mxu0 0.0
      %1549 = vmatpush1.msra.mxu0 0.0
      %1550 = vmatprep.subr.mxu0 0.0
      %1551 = vmatpush1.msra.mxu0 0.0
      %1552 = vmatprep.subr.mxu0 0.0
      %1553 = vmatpush1.msra.mxu0 0.0
      %1554 = vmatprep.subr.mxu0 0.0
      %1555 = vmatpush1.msra.mxu0 0.0
      %1556 = vmatprep.subr.mxu0 0.0
      %1557 = vmatpush1.msra.mxu0 0.0
      %1558 = vmatprep.subr.mxu0 0.0
      %1559 = vmatpush1.msra.mxu0 0.0
      %1560 = vmatprep.subr.mxu0 0.0
      %1561 = vmatpush1.msra.mxu0 0.0
      %1562 = vmatprep.subr.mxu0 0.0
      %1563 = vmatpush1.msra.mxu0 0.0
      %1564 = vmatprep.subr.mxu0 0.0
      %1565 = vmatpush1.msra.mxu0 0.0
      %1566 = vmatprep.subr.mxu0 0.0
      %1567 = vmatpush1.msra.mxu0 0.0
      %1568 = vmatprep.subr.mxu0 0.0
      %1569 = vmatpush1.msra.mxu0 0.0
      %1570 = vmatprep.subr.mxu0 0.0
      %1571 = vmatpush1.msra.mxu0 0.0
      %1572 = vmatprep.subr.mxu0 0.0
      %1573 = vmatpush1.msra.mxu0 0.0
      %1574 = vmatprep.subr.mxu0 0.0
      %1575 = vmatpush1.msra.mxu0 0.0
      %1576 = vmatprep.subr.mxu0 %v1540
      %1577 = vmatpush1.msra.mxu0 %v1539
      %1578 = vmatprep.subr.mxu0 0.0
      %1579 = vmatpush2.msra.mxu0 0.0
      %1580 = vmatprep.subr.mxu0 0.0
      %1581 = vmatpush2.msra.mxu0 0.0
      %1582 = vmatprep.subr.mxu0 0.0
      %1583 = vmatpush2.msra.mxu0 0.0
      %1584 = vmatprep.subr.mxu0 0.0
      %1585 = vmatpush2.msra.mxu0 0.0
      %1586 = vmatprep.subr.mxu0 0.0
      %1587 = vmatpush2.msra.mxu0 0.0
      %1588 = vmatprep.subr.mxu0 0.0
      %1589 = vmatpush2.msra.mxu0 0.0
      %1590 = vmatprep.subr.mxu0 0.0
      %1591 = vmatpush2.msra.mxu0 0.0
      %1592 = vmatprep.subr.mxu0 0.0
      %1593 = vmatpush2.msra.mxu0 0.0
      %1594 = vmatprep.subr.mxu0 0.0
      %1595 = vmatpush2.msra.mxu0 0.0
      %1596 = vmatprep.subr.mxu0 0.0
      %1597 = vmatpush2.msra.mxu0 0.0
      %1598 = vmatprep.subr.mxu0 0.0
      %1599 = vmatpush2.msra.mxu0 0.0
      %1600 = vmatprep.subr.mxu0 0.0
      %1601 = vmatpush2.msra.mxu0 0.0
      %1602 = vmatprep.subr.mxu0 0.0
      %1603 = vmatpush2.msra.mxu0 0.0
      %1604 = vmatprep.subr.mxu0 0.0
      %1605 = vmatpush2.msra.mxu0 0.0
      %1606 = vmatprep.subr.mxu0 0.0
      %1607 = vmatpush2.msra.mxu0 0.0
      %1608 = vmatprep.subr.mxu0 0.0
      %1609 = vmatpush2.msra.mxu0 0.0
      %1610 = vmatprep.mubr.f32.mxu0 0.0
      %1611 = vmatmul.mubr.f32.gmra.mxu0 %v1544
      %v1612 = vpop.f32.mrf.mxu0
      %v1613 = vadd.f32 0.0, %v1612
      %v1614 = vpop.f32.mrf.mxu0
      %v1615 = vadd.f32 0.0, %v1614
      %1616 = vdwg.mxu0
      %v1617 = vadd.f32 %v1531, %v1613
      %v1618 = vadd.f32 %v1532, %v1615
      %1619 = vrot.lane.b32.xlu0 %v1113, 113
      %v1620 = vpop.permute.xlu0 %1619
      %1621 = vrot.lane.b32.xlu0 %v1114, 113
      %v1622 = vpop.permute.xlu0 %1621
      %v1623 = vsel %vm814, %v1620, %v1622
      %v1624 = vsel %vm814, %v1622, %v1620
      %v1625 = vsel %vm821, %v1623, 0.0
      %v1626 = vsel %vm822, %v1624, 0.0
      %s1627 = scalar_lea.vmem %s3, 48
      %v1628 = vld [vmem:[%s1627] sm:$0xff]
      %v1630 = vsel %vm1134, %v1628, 0
      %1632 = vmatprep.subr.mxu0 0.0
      %1633 = vmatpush1.msra.mxu0 0.0
      %1634 = vmatprep.subr.mxu0 0.0
      %1635 = vmatpush1.msra.mxu0 0.0
      %1636 = vmatprep.subr.mxu0 0.0
      %1637 = vmatpush1.msra.mxu0 0.0
      %1638 = vmatprep.subr.mxu0 0.0
      %1639 = vmatpush1.msra.mxu0 0.0
      %1640 = vmatprep.subr.mxu0 0.0
      %1641 = vmatpush1.msra.mxu0 0.0
      %1642 = vmatprep.subr.mxu0 0.0
      %1643 = vmatpush1.msra.mxu0 0.0
      %1644 = vmatprep.subr.mxu0 0.0
      %1645 = vmatpush1.msra.mxu0 0.0
      %1646 = vmatprep.subr.mxu0 0.0
      %1647 = vmatpush1.msra.mxu0 0.0
      %1648 = vmatprep.subr.mxu0 0.0
      %1649 = vmatpush1.msra.mxu0 0.0
      %1650 = vmatprep.subr.mxu0 0.0
      %1651 = vmatpush1.msra.mxu0 0.0
      %1652 = vmatprep.subr.mxu0 0.0
      %1653 = vmatpush1.msra.mxu0 0.0
      %1654 = vmatprep.subr.mxu0 0.0
      %1655 = vmatpush1.msra.mxu0 0.0
      %1656 = vmatprep.subr.mxu0 0.0
      %1657 = vmatpush1.msra.mxu0 0.0
      %1658 = vmatprep.subr.mxu0 0.0
      %1659 = vmatpush1.msra.mxu0 0.0
      %1660 = vmatprep.subr.mxu0 0.0
      %1661 = vmatpush1.msra.mxu0 0.0
      %1662 = vmatprep.subr.mxu0 %v1626
      %1663 = vmatpush1.msra.mxu0 %v1625
      %1664 = vmatprep.subr.mxu0 0.0
      %1665 = vmatpush2.msra.mxu0 0.0
      %1666 = vmatprep.subr.mxu0 0.0
      %1667 = vmatpush2.msra.mxu0 0.0
      %1668 = vmatprep.subr.mxu0 0.0
      %1669 = vmatpush2.msra.mxu0 0.0
      %1670 = vmatprep.subr.mxu0 0.0
      %1671 = vmatpush2.msra.mxu0 0.0
      %1672 = vmatprep.subr.mxu0 0.0
      %1673 = vmatpush2.msra.mxu0 0.0
      %1674 = vmatprep.subr.mxu0 0.0
      %1675 = vmatpush2.msra.mxu0 0.0
      %1676 = vmatprep.subr.mxu0 0.0
      %1677 = vmatpush2.msra.mxu0 0.0
      %1678 = vmatprep.subr.mxu0 0.0
      %1679 = vmatpush2.msra.mxu0 0.0
      %1680 = vmatprep.subr.mxu0 0.0
      %1681 = vmatpush2.msra.mxu0 0.0
      %1682 = vmatprep.subr.mxu0 0.0
      %1683 = vmatpush2.msra.mxu0 0.0
      %1684 = vmatprep.subr.mxu0 0.0
      %1685 = vmatpush2.msra.mxu0 0.0
      %1686 = vmatprep.subr.mxu0 0.0
      %1687 = vmatpush2.msra.mxu0 0.0
      %1688 = vmatprep.subr.mxu0 0.0
      %1689 = vmatpush2.msra.mxu0 0.0
      %1690 = vmatprep.subr.mxu0 0.0
      %1691 = vmatpush2.msra.mxu0 0.0
      %1692 = vmatprep.subr.mxu0 0.0
      %1693 = vmatpush2.msra.mxu0 0.0
      %1694 = vmatprep.subr.mxu0 0.0
      %1695 = vmatpush2.msra.mxu0 0.0
      %1696 = vmatprep.mubr.f32.mxu0 0.0
      %1697 = vmatmul.mubr.f32.gmra.mxu0 %v1630
      %v1698 = vpop.f32.mrf.mxu0
      %v1699 = vadd.f32 0.0, %v1698
      %v1700 = vpop.f32.mrf.mxu0
      %v1701 = vadd.f32 0.0, %v1700
      %1702 = vdwg.mxu0
      %v1703 = vadd.f32 %v1617, %v1699
      %v1704 = vadd.f32 %v1618, %v1701
      %1705 = vrot.lane.b32.xlu0 %v1113, 112
      %v1706 = vpop.permute.xlu0 %1705
      %1707 = vrot.lane.b32.xlu0 %v1114, 112
      %v1708 = vpop.permute.xlu0 %1707
      %v1709 = vsel %vm913, %v1706, %v1708
      %v1710 = vsel %vm913, %v1708, %v1706
      %v1711 = vsel %vm918, %v1709, 0.0
      %v1712 = vsel %vm919, %v1710, 0.0
      %s1713 = scalar_lea.vmem %s3, 56
      %v1714 = vld [vmem:[%s1713] sm:$0xff]
      %v1716 = vsel %vm1134, %v1714, 0
      %1718 = vmatprep.subr.mxu0 0.0
      %1719 = vmatpush1.msra.mxu0 0.0
      %1720 = vmatprep.subr.mxu0 0.0
      %1721 = vmatpush1.msra.mxu0 0.0
      %1722 = vmatprep.subr.mxu0 0.0
      %1723 = vmatpush1.msra.mxu0 0.0
      %1724 = vmatprep.subr.mxu0 0.0
      %1725 = vmatpush1.msra.mxu0 0.0
      %1726 = vmatprep.subr.mxu0 0.0
      %1727 = vmatpush1.msra.mxu0 0.0
      %1728 = vmatprep.subr.mxu0 0.0
      %1729 = vmatpush1.msra.mxu0 0.0
      %1730 = vmatprep.subr.mxu0 0.0
      %1731 = vmatpush1.msra.mxu0 0.0
      %1732 = vmatprep.subr.mxu0 0.0
      %1733 = vmatpush1.msra.mxu0 0.0
      %1734 = vmatprep.subr.mxu0 0.0
      %1735 = vmatpush1.msra.mxu0 0.0
      %1736 = vmatprep.subr.mxu0 0.0
      %1737 = vmatpush1.msra.mxu0 0.0
      %1738 = vmatprep.subr.mxu0 0.0
      %1739 = vmatpush1.msra.mxu0 0.0
      %1740 = vmatprep.subr.mxu0 0.0
      %1741 = vmatpush1.msra.mxu0 0.0
      %1742 = vmatprep.subr.mxu0 0.0
      %1743 = vmatpush1.msra.mxu0 0.0
      %1744 = vmatprep.subr.mxu0 0.0
      %1745 = vmatpush1.msra.mxu0 0.0
      %1746 = vmatprep.subr.mxu0 0.0
      %1747 = vmatpush1.msra.mxu0 0.0
      %1748 = vmatprep.subr.mxu0 %v1712
      %1749 = vmatpush1.msra.mxu0 %v1711
      %1750 = vmatprep.subr.mxu0 0.0
      %1751 = vmatpush2.msra.mxu0 0.0
      %1752 = vmatprep.subr.mxu0 0.0
      %1753 = vmatpush2.msra.mxu0 0.0
      %1754 = vmatprep.subr.mxu0 0.0
      %1755 = vmatpush2.msra.mxu0 0.0
      %1756 = vmatprep.subr.mxu0 0.0
      %1757 = vmatpush2.msra.mxu0 0.0
      %1758 = vmatprep.subr.mxu0 0.0
      %1759 = vmatpush2.msra.mxu0 0.0
      %1760 = vmatprep.subr.mxu0 0.0
      %1761 = vmatpush2.msra.mxu0 0.0
      %1762 = vmatprep.subr.mxu0 0.0
      %1763 = vmatpush2.msra.mxu0 0.0
      %1764 = vmatprep.subr.mxu0 0.0
      %1765 = vmatpush2.msra.mxu0 0.0
      %1766 = vmatprep.subr.mxu0 0.0
      %1767 = vmatpush2.msra.mxu0 0.0
      %1768 = vmatprep.subr.mxu0 0.0
      %1769 = vmatpush2.msra.mxu0 0.0
      %1770 = vmatprep.subr.mxu0 0.0
      %1771 = vmatpush2.msra.mxu0 0.0
      %1772 = vmatprep.subr.mxu0 0.0
      %1773 = vmatpush2.msra.mxu0 0.0
      %1774 = vmatprep.subr.mxu0 0.0
      %1775 = vmatpush2.msra.mxu0 0.0
      %1776 = vmatprep.subr.mxu0 0.0
      %1777 = vmatpush2.msra.mxu0 0.0
      %1778 = vmatprep.subr.mxu0 0.0
      %1779 = vmatpush2.msra.mxu0 0.0
      %1780 = vmatprep.subr.mxu0 0.0
      %1781 = vmatpush2.msra.mxu0 0.0
      %1782 = vmatprep.mubr.f32.mxu0 0.0
      %1783 = vmatmul.mubr.f32.gmra.mxu0 %v1716
      %v1784 = vpop.f32.mrf.mxu0
      %v1785 = vadd.f32 0.0, %v1784
      %v1786 = vpop.f32.mrf.mxu0
      %v1787 = vadd.f32 0.0, %v1786
      %1788 = vdwg.mxu0
      %v1789 = vadd.f32 %v1703, %v1785
      %v1790 = vadd.f32 %v1704, %v1787
      %1791 = vrot.lane.b32.xlu0 %v1113, 111
      %v1792 = vpop.permute.xlu0 %1791
      %1793 = vrot.lane.b32.xlu0 %v1114, 111
      %v1794 = vpop.permute.xlu0 %1793
      %v1795 = vsel %vm1010, %v1792, %v1794
      %v1796 = vsel %vm1010, %v1794, %v1792
      %v1797 = vsel %vm1017, %v1795, 0.0
      %v1798 = vsel %vm1018, %v1796, 0.0
      %s1799 = scalar_lea.vmem %s3, 64
      %v1800 = vld [vmem:[%s1799] sm:$0xff]
      %v1802 = vsel %vm1134, %v1800, 0
      %1804 = vmatprep.subr.mxu0 0.0
      %1805 = vmatpush1.msra.mxu0 0.0
      %1806 = vmatprep.subr.mxu0 0.0
      %1807 = vmatpush1.msra.mxu0 0.0
      %1808 = vmatprep.subr.mxu0 0.0
      %1809 = vmatpush1.msra.mxu0 0.0
      %1810 = vmatprep.subr.mxu0 0.0
      %1811 = vmatpush1.msra.mxu0 0.0
      %1812 = vmatprep.subr.mxu0 0.0
      %1813 = vmatpush1.msra.mxu0 0.0
      %1814 = vmatprep.subr.mxu0 0.0
      %1815 = vmatpush1.msra.mxu0 0.0
      %1816 = vmatprep.subr.mxu0 0.0
      %1817 = vmatpush1.msra.mxu0 0.0
      %1818 = vmatprep.subr.mxu0 0.0
      %1819 = vmatpush1.msra.mxu0 0.0
      %1820 = vmatprep.subr.mxu0 0.0
      %1821 = vmatpush1.msra.mxu0 0.0
      %1822 = vmatprep.subr.mxu0 0.0
      %1823 = vmatpush1.msra.mxu0 0.0
      %1824 = vmatprep.subr.mxu0 0.0
      %1825 = vmatpush1.msra.mxu0 0.0
      %1826 = vmatprep.subr.mxu0 0.0
      %1827 = vmatpush1.msra.mxu0 0.0
      %1828 = vmatprep.subr.mxu0 0.0
      %1829 = vmatpush1.msra.mxu0 0.0
      %1830 = vmatprep.subr.mxu0 0.0
      %1831 = vmatpush1.msra.mxu0 0.0
      %1832 = vmatprep.subr.mxu0 0.0
      %1833 = vmatpush1.msra.mxu0 0.0
      %1834 = vmatprep.subr.mxu0 %v1798
      %1835 = vmatpush1.msra.mxu0 %v1797
      %1836 = vmatprep.subr.mxu0 0.0
      %1837 = vmatpush2.msra.mxu0 0.0
      %1838 = vmatprep.subr.mxu0 0.0
      %1839 = vmatpush2.msra.mxu0 0.0
      %1840 = vmatprep.subr.mxu0 0.0
      %1841 = vmatpush2.msra.mxu0 0.0
      %1842 = vmatprep.subr.mxu0 0.0
      %1843 = vmatpush2.msra.mxu0 0.0
      %1844 = vmatprep.subr.mxu0 0.0
      %1845 = vmatpush2.msra.mxu0 0.0
      %1846 = vmatprep.subr.mxu0 0.0
      %1847 = vmatpush2.msra.mxu0 0.0
      %1848 = vmatprep.subr.mxu0 0.0
      %1849 = vmatpush2.msra.mxu0 0.0
      %1850 = vmatprep.subr.mxu0 0.0
      %1851 = vmatpush2.msra.mxu0 0.0
      %1852 = vmatprep.subr.mxu0 0.0
      %1853 = vmatpush2.msra.mxu0 0.0
      %1854 = vmatprep.subr.mxu0 0.0
      %1855 = vmatpush2.msra.mxu0 0.0
      %1856 = vmatprep.subr.mxu0 0.0
      %1857 = vmatpush2.msra.mxu0 0.0
      %1858 = vmatprep.subr.mxu0 0.0
      %1859 = vmatpush2.msra.mxu0 0.0
      %1860 = vmatprep.subr.mxu0 0.0
      %1861 = vmatpush2.msra.mxu0 0.0
      %1862 = vmatprep.subr.mxu0 0.0
      %1863 = vmatpush2.msra.mxu0 0.0
      %1864 = vmatprep.subr.mxu0 0.0
      %1865 = vmatpush2.msra.mxu0 0.0
      %1866 = vmatprep.subr.mxu0 0.0
      %1867 = vmatpush2.msra.mxu0 0.0
      %1868 = vmatprep.mubr.f32.mxu0 0.0
      %1869 = vmatmul.mubr.f32.gmra.mxu0 %v1802
      %v1870 = vpop.f32.mrf.mxu0
      %v1871 = vadd.f32 0.0, %v1870
      %v1872 = vpop.f32.mrf.mxu0
      %v1873 = vadd.f32 0.0, %v1872
      %1874 = vdwg.mxu0
      %v1875 = vadd.f32 %v1789, %v1871
      %v1876 = vadd.f32 %v1790, %v1873
      %v1877 = vld [vmem:[%s4] sm:$0xff]
      %1879 = vset.pattern.permute.xlu0 0
      %1880 = vperm.xlu0 %1879, %v1877
      %v1881 = vpop.permute.xlu0 %1880
      %v1883 = vadd.f32 %v1875, %v1881
      %v1884 = vadd.f32 %v1876, %v1881
      %v1885 = vmax.f32 %v1883, 0.0
      %v1886 = vmax.f32 %v1884, 0.0
      %1887 = vst [vmem:[%s224] sm:$0xff] %v1885
      %1888 = vst [vmem:[%s224 + $0x8] sm:$0xff] %v1886
      %p1889 = scmp.lt.s32.totalorder %s16, 1
      %s1890 = scalar_select %p1889, %s16, 1
      %s1891 = smul.addr %s1890, 2
      %s1892 = smul.addr %s1891, 8
      %s1893 = scalar_lea.vmem %s5, %s1892
      // Predicated region
      $region41: #{kan_double_conv_forward.1} parent=39 // pred_check
        %p1894 = pneg %p144
      $region42: #{kan_double_conv_forward.1} parent=39 // pred_check_branch
        %1896 = sbr.rel (%p1894) target = $region44
      $region43: #{kan_double_conv_forward.1} parent=39 // pred_region
        _
      $region44: #{kan_double_conv_forward.1} parent=39 // pred_fallthru
        _
    $region40: #{kan_double_conv_forward.1} parent=5 // pred_fallthru
      _
    %p1897 = scmp.le.s32.totalorder 2, %s11
    // Predicated region
    $region45: #{kan_double_conv_forward.1} parent=5 // pred_check
      %p1898 = pneg %p1897
    $region46: #{kan_double_conv_forward.1} parent=5 // pred_check_branch
      %1900 = sbr.rel (%p1898) target = $region48
    $region47: #{kan_double_conv_forward.1} parent=5 // pred_region
      %s1901 = ssub.s32 %s11, 2
      // Predicated region
      $region49: #{kan_double_conv_forward.1} parent=47 // pred_check
        %p1902 = pneg %p150
      $region50: #{kan_double_conv_forward.1} parent=47 // pred_check_branch
        %1904 = sbr.rel (%p1902) target = $region52
      $region51: #{kan_double_conv_forward.1} parent=47 // pred_region
        %p1905 = scmp.lt.s32.totalorder %s17, 1
        %s1906 = scalar_select %p1905, %s17, 1
        %s1907 = smul.addr %s1906, 2
        %s1908 = smul.addr %s1907, 8
        %s1909 = scalar_lea.vmem %s5, %s1908
      $region52: #{kan_double_conv_forward.1} parent=47 // pred_fallthru
        _
    $region48: #{kan_double_conv_forward.1} parent=5 // pred_fallthru
      _
  $region6: #{kan_double_conv_forward.1} parent=0 // loop_footer
    %s15 = sadd.s32 1, %s11
  $region7: #{kan_double_conv_forward.1} parent=0 // loop_footer_branch
    %10 = sbr.rel target = $region3
  $region8: #{kan_double_conv_forward.1} parent=0 // loop_exit
    _

</llo_original>
